<compile_context>
chip_gen: v7x
topology: tpu7x:2x2x1
jax: 0.10.0
libtpu: 0.0.40
codegen_flags: <defaults>
</compile_context>

<pallas_src>
import numpy as np
import jax
import jax.numpy as jnp
from jax.experimental import pallas as pl
from jax.experimental.pallas import tpu as pltpu

# ---- model sizes (consistent with the module's constructor args) ----
B = 128                    # batch
X_DIM = (1, 16, 16)        # (C, H, W)
IMG = X_DIM[0] * X_DIM[1] * X_DIM[2]   # 256 = image_size
ENC_DIM = 128              # enc_dim
DEC_DIM = 128              # dec_dim
Z_DIM = 8                  # z_dim
N_FLOW = 2                 # n_flow (flow 0 uses h->v weights, flows >0 share
                           # the z->z weights, standard HF)

LANE = 128                 # lane-tile width
LOG2PI = float(np.log(2.0 * np.pi))

# ---- packed-buffer layout (all offsets derived from the constants) ----
HEADS_W = 3 * LANE                       # fused [mu|logvar|v] head width (lane-aligned)
X_IN_COLS = IMG + LANE                   # x (0:IMG) | eps (IMG:IMG+Z) | zero pad
MISC_COLS = 2 * IMG                      # misc buffer width
ROW_WD = 0                               # rows 0:Z_DIM        -> wd1 / wv1
ROW_BIAS = ((Z_DIM + 7) // 8) * 8        # row 8 (sublane tile) -> be1 | bd1 | bv1
ROW_HEADB = ROW_BIAS + 8                 # row 16               -> fused head bias
ROW_DECB = ROW_HEADB + 8                 # row 24               -> [bdmu | bdlv]
MISC_ROWS = ROW_DECB + 8                 # 32 rows (sublane aligned)

assert Z_DIM <= LANE
assert ENC_DIM + DEC_DIM + Z_DIM <= MISC_COLS
assert HEADS_W <= MISC_COLS and DEC_DIM + Z_DIM <= MISC_COLS


def hf_vae_elbo_kernel(xin_ref, w_enc_ref, w_heads_ref, w_dec_ref, misc_ref,
                       elbo_ref):
    xin = xin_ref[...]                                # (TB, IMG+LANE), f32
    x = xin[:, 0:IMG]                                 # (TB, IMG)
    eps = xin[:, IMG:IMG + Z_DIM]                     # (TB, Z)
    misc = misc_ref[...]                              # (MISC_ROWS, MISC_COLS)

    # unpack small weights / biases from the packed misc buffer (static slices)
    wd1 = misc[ROW_WD:ROW_WD + Z_DIM, 0:DEC_DIM]                      # (Z, DEC)
    wv1 = misc[ROW_WD:ROW_WD + Z_DIM, DEC_DIM:DEC_DIM + Z_DIM]        # (Z, Z)
    be1 = misc[ROW_BIAS:ROW_BIAS + 1, 0:ENC_DIM]                      # (1, ENC)
    bd1 = misc[ROW_BIAS:ROW_BIAS + 1, ENC_DIM:ENC_DIM + DEC_DIM]      # (1, DEC)
    bv1 = misc[ROW_BIAS:ROW_BIAS + 1,
               ENC_DIM + DEC_DIM:ENC_DIM + DEC_DIM + Z_DIM]           # (1, Z)
    b_heads = misc[ROW_HEADB:ROW_HEADB + 1, 0:HEADS_W]                # (1, 3*LANE)
    b_dec = misc[ROW_DECB:ROW_DECB + 1, 0:2 * IMG]                    # (1, 2*IMG)

    # ---------------- encoder: x -> h -> (mu, logvar, v) [fused heads] -------
    # bf16 operands on the big matmul, f32 accumulation.
    h = jnp.tanh(jnp.dot(x.astype(jnp.bfloat16), w_enc_ref[...],
                         preferred_element_type=jnp.float32) + be1)   # (TB, ENC)
    heads = jnp.dot(h, w_heads_ref[...],
                    preferred_element_type=jnp.float32) + b_heads     # (TB, 3*LANE)
    # lane-tile-aligned head slices (offsets 0 / 128 / 256)
    mu = heads[:, 0:Z_DIM]
    logvar = heads[:, LANE:LANE + Z_DIM]
    v = heads[:, 2 * LANE:2 * LANE + Z_DIM]

    # ---------------- reparameterized sample z ~ q(z|x) ----------------------
    z = mu + eps * jnp.exp(0.5 * logvar)              # (TB, Z)

    # ---------------- Householder flow: z_flow = H z -------------------------
    # H = H_K ... H_1,  H_k = I - 2 v_k v_k^T / ||v_k||^2, applied sequentially.
    z_flow = z
    for k in range(N_FLOW):
        if k > 0:
            v = jnp.dot(v, wv1, preferred_element_type=jnp.float32) + bv1
        vz = jnp.sum(v * z_flow, axis=-1, keepdims=True)
        vv = jnp.sum(v * v, axis=-1, keepdims=True) + 1e-12
        z_flow = z_flow - 2.0 * v * (vz / vv)         # exact divide (tiny tensor)

    # ---------------- decoder: z_flow -> Gaussian over x [fused heads] -------
    hd = jnp.tanh(jnp.dot(z_flow, wd1, preferred_element_type=jnp.float32)
                  + bd1)                              # (TB, DEC)
    dec = jnp.dot(hd.astype(jnp.bfloat16), w_dec_ref[...],
                  preferred_element_type=jnp.float32) + b_dec         # (TB, 2*IMG)
    x_mu = dec[:, 0:IMG]                              # lane-aligned split at 256
    x_lv = dec[:, IMG:2 * IMG]

    # ---------------- diagonal-Gaussian log-probabilities --------------------
    lp_x = -0.5 * jnp.sum(LOG2PI + x_lv + (x - x_mu) ** 2 * jnp.exp(-x_lv),
                          axis=-1, keepdims=True)     # log p(x|z_flow)
    lp_prior = -0.5 * jnp.sum(LOG2PI + z_flow ** 2,
                              axis=-1, keepdims=True)  # log p(z_flow), N(0,I)
    lq = -0.5 * jnp.sum(LOG2PI + logvar + eps ** 2,
                        axis=-1, keepdims=True)       # log q(z|x)

    elbo = lp_x + lp_prior - lq                       # (TB, 1) per-sample ELBO
    # lane-dense output: one (1, 1, TB) row (unmasked store)
    elbo_ref[...] = elbo.reshape(1, 1, elbo.shape[0])


def init_params(key):
    def lin(k, fin, fout):
        w = jax.random.normal(k, (fin, fout), jnp.float32) / jnp.sqrt(float(fin))
        b = jnp.zeros((1, fout), jnp.float32)
        return w, b
    keys = jax.random.split(key, 8)
    p = {}
    p["we1"], p["be1"] = lin(keys[0], IMG, ENC_DIM)       # encoder hidden
    p["wmu"], p["bmu"] = lin(keys[1], ENC_DIM, Z_DIM)     # q(z|x) mean
    p["wlv"], p["blv"] = lin(keys[2], ENC_DIM, Z_DIM)     # q(z|x) logvar
    p["wv0"], p["bv0"] = lin(keys[3], ENC_DIM, Z_DIM)     # HF flow 1: h -> v
    p["wv1"], p["bv1"] = lin(keys[4], Z_DIM, Z_DIM)       # HF flow k>1: v -> v
    p["wd1"], p["bd1"] = lin(keys[5], Z_DIM, DEC_DIM)     # decoder hidden
    p["wdmu"], p["bdmu"] = lin(keys[6], DEC_DIM, IMG)     # p(x|z) mean
    p["wdlv"], p["bdlv"] = lin(keys[7], DEC_DIM, IMG)     # p(x|z) logvar
    return p


def pack_params(p):
    """Pack the 16 parameter tensors into 4 lane-dense buffers."""
    w_enc = p["we1"].astype(jnp.bfloat16)                              # (IMG, ENC) bf16
    # fused encoder heads, lane-tile aligned at columns 0 / 128 / 256
    w_heads = jnp.zeros((ENC_DIM, HEADS_W), jnp.float32)
    w_heads = w_heads.at[:, 0:Z_DIM].set(p["wmu"])
    w_heads = w_heads.at[:, LANE:LANE + Z_DIM].set(p["wlv"])
    w_heads = w_heads.at[:, 2 * LANE:2 * LANE + Z_DIM].set(p["wv0"])
    # fused decoder heads, bf16 for the MXU
    w_dec_heads = jnp.concatenate([p["wdmu"], p["wdlv"]],
                                  axis=1).astype(jnp.bfloat16)         # (DEC, 2*IMG)
    # misc buffer: wd1 / wv1 / every bias (offsets derived from constants)
    misc = jnp.zeros((MISC_ROWS, MISC_COLS), jnp.float32)
    misc = misc.at[ROW_WD:ROW_WD + Z_DIM, 0:DEC_DIM].set(p["wd1"])
    misc = misc.at[ROW_WD:ROW_WD + Z_DIM, DEC_DIM:DEC_DIM + Z_DIM].set(p["wv1"])
    misc = misc.at[ROW_BIAS, 0:ENC_DIM].set(p["be1"][0])
    misc = misc.at[ROW_BIAS, ENC_DIM:ENC_DIM + DEC_DIM].set(p["bd1"][0])
    misc = misc.at[ROW_BIAS,
                   ENC_DIM + DEC_DIM:ENC_DIM + DEC_DIM + Z_DIM].set(p["bv1"][0])
    misc = misc.at[ROW_HEADB, 0:Z_DIM].set(p["bmu"][0])
    misc = misc.at[ROW_HEADB, LANE:LANE + Z_DIM].set(p["blv"][0])
    misc = misc.at[ROW_HEADB, 2 * LANE:2 * LANE + Z_DIM].set(p["bv0"][0])
    misc = misc.at[ROW_DECB, 0:IMG].set(p["bdmu"][0])
    misc = misc.at[ROW_DECB, IMG:2 * IMG].set(p["bdlv"][0])
    return w_enc, w_heads, w_dec_heads, misc


def _pick_batch_tile(bsz):
    """Single grid step on 1-TC chips (v5e/v6e); split batch in two on v7x."""
    try:
        kind = jax.devices()[0].device_kind.lower()
    except Exception:
        kind = ""
    two_tc = ("v7" in kind) or ("7x" in kind)
    if two_tc and bsz % 2 == 0 and (bsz // 2) % 8 == 0:
        return bsz // 2
    return bsz


def hf_forward(x_nchw, eps, p, *, tb=None):
    bsz = x_nchw.shape[0]
    if tb is None:
        tb = _pick_batch_tile(bsz)
    assert bsz % tb == 0 and tb % 8 == 0
    grid_n = bsz // tb

    x = x_nchw.reshape(bsz, -1).astype(jnp.float32)   # NCHW -> (B, IMG)
    # fold eps into the x stream: one lane-padded (B, 384) input DMA per step
    pad = jnp.zeros((bsz, X_IN_COLS - IMG - Z_DIM), jnp.float32)
    xin = jnp.concatenate([x, eps.astype(jnp.float32), pad], axis=1)

    w_enc, w_heads, w_dec_heads, misc = pack_params(p)

    def full(shape):
        # whole-array VMEM-resident parameter block; constant index_map means it
        # is DMA'd once (default pipeline mode kept — Buffered(1) is a no-value
        # tidiness tweak at this size).
        return pl.BlockSpec(shape, lambda i: (0, 0))

    elbo = pl.pallas_call(
        hf_vae_elbo_kernel,
        out_shape=jax.ShapeDtypeStruct((grid_n, 1, tb), jnp.float32),
        grid=(grid_n,),
        in_specs=[
            pl.BlockSpec((tb, X_IN_COLS), lambda i: (i, 0)),   # x | eps
            full((IMG, ENC_DIM)),                              # w_enc (bf16)
            full((ENC_DIM, HEADS_W)),                          # [wmu|wlv|wv0] padded
            full((DEC_DIM, 2 * IMG)),                          # [wdmu|wdlv] (bf16)
            full((MISC_ROWS, MISC_COLS)),                      # wd1/wv1/biases
        ],
        out_specs=pl.BlockSpec((1, 1, tb), lambda i: (i, 0, 0)),  # lane-dense ELBO
        compiler_params=pltpu.CompilerParams(
            dimension_semantics=("parallel",)),                # v7x: 2 TCs
    )(xin, w_enc, w_heads, w_dec_heads, misc)
    return -jnp.mean(elbo)                                     # loss = -mean(ELBO)


def reference_loss(x_nchw, eps, p):
    """Pure-JAX f32 reference mirroring the kernel math."""
    x = x_nchw.reshape(x_nchw.shape[0], -1).astype(jnp.float32)
    h = jnp.tanh(x @ p["we1"] + p["be1"])
    mu = h @ p["wmu"] + p["bmu"]
    logvar = h @ p["wlv"] + p["blv"]
    z = mu + eps * jnp.exp(0.5 * logvar)
    v = h @ p["wv0"] + p["bv0"]
    z_flow = z
    for k in range(N_FLOW):
        if k > 0:
            v = v @ p["wv1"] + p["bv1"]
        vz = jnp.sum(v * z_flow, -1, keepdims=True)
        vv = jnp.sum(v * v, -1, keepdims=True) + 1e-12
        z_flow = z_flow - 2.0 * v * (vz / vv)
    hd = jnp.tanh(z_flow @ p["wd1"] + p["bd1"])
    x_mu = hd @ p["wdmu"] + p["bdmu"]
    x_lv = hd @ p["wdlv"] + p["bdlv"]
    lp_x = -0.5 * jnp.sum(LOG2PI + x_lv + (x - x_mu) ** 2 * jnp.exp(-x_lv), -1)
    lp_prior = -0.5 * jnp.sum(LOG2PI + z_flow ** 2, -1)
    lq = -0.5 * jnp.sum(LOG2PI + logvar + eps ** 2, -1)
    return -jnp.mean(lp_x + lp_prior - lq)


if __name__ == "__main__":
    key = jax.random.PRNGKey(0)
    kx, keps, kp = jax.random.split(key, 3)
    x = jax.random.uniform(kx, (B,) + X_DIM, jnp.float32)      # NCHW input
    eps = jax.random.normal(keps, (B, Z_DIM), jnp.float32)     # reparam noise
    params = init_params(kp)

    loss = hf_forward(x, eps, params)
    jax.block_until_ready(loss)

    ref = reference_loss(x, eps, params)
    # tolerance absorbs the bf16-operand rounding of the two big MXU matmuls
    # (f32 accumulation); the flow uses an exact divide so no other slack needed.
    assert np.allclose(np.asarray(loss), np.asarray(ref), rtol=2e-3, atol=2e-3), (
        float(loss), float(ref))
    print("KERNEL_OK")
</pallas_src>

<mosaic_0001>
module attributes {stable_mosaic.version = 11 : i64} {
  func.func @hf_vae_elbo_kernel(%arg0: i32, %arg1: memref<128x384xf32, #tpu.memory_space<vmem>>, %arg2: memref<256x128xbf16, #tpu.memory_space<vmem>>, %arg3: memref<128x384xf32, #tpu.memory_space<vmem>>, %arg4: memref<128x512xbf16, #tpu.memory_space<vmem>>, %arg5: memref<32x512xf32, #tpu.memory_space<vmem>>, %arg6: memref<1x1x128xf32, #tpu.memory_space<vmem>>) attributes {dimension_semantics = [#tpu.dimension_semantics<parallel>], iteration_bounds = array<i64: 1>, scalar_prefetch = 0 : i64, scratch_operands = 0 : i64, tpu.core_type = #tpu.core_type<tc>, window_params = [{transform_indices = @transform_0, window_bounds = array<i64: 128, 384>}, {pipeline_mode = #tpu.pipeline_mode<synchronous>, transform_indices = @transform_1, window_bounds = array<i64: 256, 128>}, {pipeline_mode = #tpu.pipeline_mode<synchronous>, transform_indices = @transform_2, window_bounds = array<i64: 128, 384>}, {pipeline_mode = #tpu.pipeline_mode<synchronous>, transform_indices = @transform_3, window_bounds = array<i64: 128, 512>}, {pipeline_mode = #tpu.pipeline_mode<synchronous>, transform_indices = @transform_4, window_bounds = array<i64: 32, 512>}, {transform_indices = @transform_5, window_bounds = array<i64: 1, 1, 128>}]} {
    %c0 = arith.constant 0 : index
    %c0_0 = arith.constant 0 : index
    %0 = vector.load %arg1[%c0, %c0_0] : memref<128x384xf32, #tpu.memory_space<vmem>>, vector<128x384xf32>
    %1 = vector.extract_strided_slice %0 {offsets = [0, 0], sizes = [128, 256], strides = [1, 1]} : vector<128x384xf32> to vector<128x256xf32>
    %2 = vector.extract_strided_slice %0 {offsets = [0, 256], sizes = [128, 8], strides = [1, 1]} : vector<128x384xf32> to vector<128x8xf32>
    %c0_1 = arith.constant 0 : index
    %c0_2 = arith.constant 0 : index
    %3 = vector.load %arg5[%c0_1, %c0_2] : memref<32x512xf32, #tpu.memory_space<vmem>>, vector<32x512xf32>
    %4 = vector.extract_strided_slice %3 {offsets = [0, 0], sizes = [8, 128], strides = [1, 1]} : vector<32x512xf32> to vector<8x128xf32>
    %5 = vector.extract_strided_slice %3 {offsets = [0, 128], sizes = [8, 8], strides = [1, 1]} : vector<32x512xf32> to vector<8x8xf32>
    %6 = vector.extract_strided_slice %3 {offsets = [8, 0], sizes = [1, 128], strides = [1, 1]} : vector<32x512xf32> to vector<1x128xf32>
    %7 = vector.extract_strided_slice %3 {offsets = [8, 128], sizes = [1, 128], strides = [1, 1]} : vector<32x512xf32> to vector<1x128xf32>
    %8 = vector.extract_strided_slice %3 {offsets = [8, 256], sizes = [1, 8], strides = [1, 1]} : vector<32x512xf32> to vector<1x8xf32>
    %9 = vector.extract_strided_slice %3 {offsets = [16, 0], sizes = [1, 384], strides = [1, 1]} : vector<32x512xf32> to vector<1x384xf32>
    %10 = vector.extract_strided_slice %3 {offsets = [24, 0], sizes = [1, 512], strides = [1, 1]} : vector<32x512xf32> to vector<1x512xf32>
    %11 = arith.truncf %1 : vector<128x256xf32> to vector<128x256xbf16>
    %c0_3 = arith.constant 0 : index
    %c0_4 = arith.constant 0 : index
    %12 = vector.load %arg2[%c0_3, %c0_4] : memref<256x128xbf16, #tpu.memory_space<vmem>>, vector<256x128xbf16>
    %cst = arith.constant dense<0.000000e+00> : vector<128x128xf32>
    %13 = tpu.matmul %11, %12, %cst {dimension_numbers = #tpu.dot_dimension_numbers<[1], [0], [0], [1], [0, 0, 1, 1], [], []>} : vector<128x256xbf16>, vector<256x128xbf16>, vector<128x128xf32> -> vector<128x128xf32>
    %14 = vector.broadcast %6 : vector<1x128xf32> to vector<128x128xf32>
    %15 = arith.addf %13, %14 : vector<128x128xf32>
    %16 = math.tanh %15 : vector<128x128xf32>
    %c0_5 = arith.constant 0 : index
    %c0_6 = arith.constant 0 : index
    %17 = vector.load %arg3[%c0_5, %c0_6] : memref<128x384xf32, #tpu.memory_space<vmem>>, vector<128x384xf32>
    %cst_7 = arith.constant dense<0.000000e+00> : vector<128x384xf32>
    %18 = tpu.matmul %16, %17, %cst_7 {dimension_numbers = #tpu.dot_dimension_numbers<[1], [0], [0], [1], [0, 0, 1, 1], [], []>} : vector<128x128xf32>, vector<128x384xf32>, vector<128x384xf32> -> vector<128x384xf32>
    %19 = vector.broadcast %9 : vector<1x384xf32> to vector<128x384xf32>
    %20 = arith.addf %18, %19 : vector<128x384xf32>
    %21 = vector.extract_strided_slice %20 {offsets = [0, 0], sizes = [128, 8], strides = [1, 1]} : vector<128x384xf32> to vector<128x8xf32>
    %22 = vector.extract_strided_slice %20 {offsets = [0, 128], sizes = [128, 8], strides = [1, 1]} : vector<128x384xf32> to vector<128x8xf32>
    %23 = vector.extract_strided_slice %20 {offsets = [0, 256], sizes = [128, 8], strides = [1, 1]} : vector<128x384xf32> to vector<128x8xf32>
    %cst_8 = arith.constant 5.000000e-01 : f32
    %24 = vector.broadcast %cst_8 : f32 to vector<128x8xf32>
    %25 = arith.mulf %24, %22 : vector<128x8xf32>
    %26 = math.exp %25 : vector<128x8xf32>
    %27 = arith.mulf %2, %26 : vector<128x8xf32>
    %28 = arith.addf %21, %27 : vector<128x8xf32>
    %29 = arith.mulf %23, %28 : vector<128x8xf32>
    %cst_9 = arith.constant dense<0.000000e+00> : vector<128xf32>
    %30 = vector.multi_reduction <add>, %29, %cst_9 [1] : vector<128x8xf32> to vector<128xf32>
    %31 = vector.shape_cast %30 : vector<128xf32> to vector<128x1xf32>
    %32 = arith.mulf %23, %23 : vector<128x8xf32>
    %cst_10 = arith.constant dense<0.000000e+00> : vector<128xf32>
    %33 = vector.multi_reduction <add>, %32, %cst_10 [1] : vector<128x8xf32> to vector<128xf32>
    %34 = vector.shape_cast %33 : vector<128xf32> to vector<128x1xf32>
    %cst_11 = arith.constant 9.99999996E-13 : f32
    %35 = vector.broadcast %cst_11 : f32 to vector<128x1xf32>
    %36 = arith.addf %34, %35 : vector<128x1xf32>
    %cst_12 = arith.constant 2.000000e+00 : f32
    %37 = vector.broadcast %cst_12 : f32 to vector<128x8xf32>
    %38 = arith.mulf %37, %23 : vector<128x8xf32>
    %39 = arith.divf %31, %36 : vector<128x1xf32>
    %40 = vector.broadcast %39 : vector<128x1xf32> to vector<128x8xf32>
    %41 = arith.mulf %38, %40 : vector<128x8xf32>
    %42 = arith.subf %28, %41 : vector<128x8xf32>
    %cst_13 = arith.constant dense<0.000000e+00> : vector<128x8xf32>
    %43 = tpu.matmul %23, %5, %cst_13 {dimension_numbers = #tpu.dot_dimension_numbers<[1], [0], [0], [1], [0, 0, 1, 1], [], []>} : vector<128x8xf32>, vector<8x8xf32>, vector<128x8xf32> -> vector<128x8xf32>
    %44 = vector.broadcast %8 : vector<1x8xf32> to vector<128x8xf32>
    %45 = arith.addf %43, %44 : vector<128x8xf32>
    %46 = arith.mulf %45, %42 : vector<128x8xf32>
    %cst_14 = arith.constant dense<0.000000e+00> : vector<128xf32>
    %47 = vector.multi_reduction <add>, %46, %cst_14 [1] : vector<128x8xf32> to vector<128xf32>
    %48 = vector.shape_cast %47 : vector<128xf32> to vector<128x1xf32>
    %49 = arith.mulf %45, %45 : vector<128x8xf32>
    %cst_15 = arith.constant dense<0.000000e+00> : vector<128xf32>
    %50 = vector.multi_reduction <add>, %49, %cst_15 [1] : vector<128x8xf32> to vector<128xf32>
    %51 = vector.shape_cast %50 : vector<128xf32> to vector<128x1xf32>
    %cst_16 = arith.constant 9.99999996E-13 : f32
    %52 = vector.broadcast %cst_16 : f32 to vector<128x1xf32>
    %53 = arith.addf %51, %52 : vector<128x1xf32>
    %cst_17 = arith.constant 2.000000e+00 : f32
    %54 = vector.broadcast %cst_17 : f32 to vector<128x8xf32>
    %55 = arith.mulf %54, %45 : vector<128x8xf32>
    %56 = arith.divf %48, %53 : vector<128x1xf32>
    %57 = vector.broadcast %56 : vector<128x1xf32> to vector<128x8xf32>
    %58 = arith.mulf %55, %57 : vector<128x8xf32>
    %59 = arith.subf %42, %58 : vector<128x8xf32>
    %cst_18 = arith.constant dense<0.000000e+00> : vector<128x128xf32>
    %60 = tpu.matmul %59, %4, %cst_18 {dimension_numbers = #tpu.dot_dimension_numbers<[1], [0], [0], [1], [0, 0, 1, 1], [], []>} : vector<128x8xf32>, vector<8x128xf32>, vector<128x128xf32> -> vector<128x128xf32>
    %61 = vector.broadcast %7 : vector<1x128xf32> to vector<128x128xf32>
    %62 = arith.addf %60, %61 : vector<128x128xf32>
    %63 = math.tanh %62 : vector<128x128xf32>
    %64 = arith.truncf %63 : vector<128x128xf32> to vector<128x128xbf16>
    %c0_19 = arith.constant 0 : index
    %c0_20 = arith.constant 0 : index
    %65 = vector.load %arg4[%c0_19, %c0_20] : memref<128x512xbf16, #tpu.memory_space<vmem>>, vector<128x512xbf16>
    %cst_21 = arith.constant dense<0.000000e+00> : vector<128x512xf32>
    %66 = tpu.matmul %64, %65, %cst_21 {dimension_numbers = #tpu.dot_dimension_numbers<[1], [0], [0], [1], [0, 0, 1, 1], [], []>} : vector<128x128xbf16>, vector<128x512xbf16>, vector<128x512xf32> -> vector<128x512xf32>
    %67 = vector.broadcast %10 : vector<1x512xf32> to vector<128x512xf32>
    %68 = arith.addf %66, %67 : vector<128x512xf32>
    %69 = vector.extract_strided_slice %68 {offsets = [0, 0], sizes = [128, 256], strides = [1, 1]} : vector<128x512xf32> to vector<128x256xf32>
    %70 = vector.extract_strided_slice %68 {offsets = [0, 256], sizes = [128, 256], strides = [1, 1]} : vector<128x512xf32> to vector<128x256xf32>
    %cst_22 = arith.constant 1.83787704 : f32
    %71 = vector.broadcast %cst_22 : f32 to vector<128x256xf32>
    %72 = arith.addf %71, %70 : vector<128x256xf32>
    %73 = arith.subf %1, %69 : vector<128x256xf32>
    %74 = arith.mulf %73, %73 : vector<128x256xf32>
    %cst_23 = arith.constant 0.000000e+00 : f32
    %75 = vector.broadcast %cst_23 : f32 to vector<128x256xf32>
    %76 = arith.subf %75, %70 : vector<128x256xf32>
    %77 = math.exp %76 : vector<128x256xf32>
    %78 = arith.mulf %74, %77 : vector<128x256xf32>
    %79 = arith.addf %72, %78 : vector<128x256xf32>
    %cst_24 = arith.constant dense<0.000000e+00> : vector<128xf32>
    %80 = vector.multi_reduction <add>, %79, %cst_24 [1] : vector<128x256xf32> to vector<128xf32>
    %81 = vector.shape_cast %80 : vector<128xf32> to vector<128x1xf32>
    %cst_25 = arith.constant -5.000000e-01 : f32
    %82 = vector.broadcast %cst_25 : f32 to vector<128x1xf32>
    %83 = arith.mulf %82, %81 : vector<128x1xf32>
    %84 = arith.mulf %59, %59 : vector<128x8xf32>
    %cst_26 = arith.constant 1.83787704 : f32
    %85 = vector.broadcast %cst_26 : f32 to vector<128x8xf32>
    %86 = arith.addf %85, %84 : vector<128x8xf32>
    %cst_27 = arith.constant dense<0.000000e+00> : vector<128xf32>
    %87 = vector.multi_reduction <add>, %86, %cst_27 [1] : vector<128x8xf32> to vector<128xf32>
    %88 = vector.shape_cast %87 : vector<128xf32> to vector<128x1xf32>
    %cst_28 = arith.constant -5.000000e-01 : f32
    %89 = vector.broadcast %cst_28 : f32 to vector<128x1xf32>
    %90 = arith.mulf %89, %88 : vector<128x1xf32>
    %cst_29 = arith.constant 1.83787704 : f32
    %91 = vector.broadcast %cst_29 : f32 to vector<128x8xf32>
    %92 = arith.addf %91, %22 : vector<128x8xf32>
    %93 = arith.mulf %2, %2 : vector<128x8xf32>
    %94 = arith.addf %92, %93 : vector<128x8xf32>
    %cst_30 = arith.constant dense<0.000000e+00> : vector<128xf32>
    %95 = vector.multi_reduction <add>, %94, %cst_30 [1] : vector<128x8xf32> to vector<128xf32>
    %96 = vector.shape_cast %95 : vector<128xf32> to vector<128x1xf32>
    %cst_31 = arith.constant -5.000000e-01 : f32
    %97 = vector.broadcast %cst_31 : f32 to vector<128x1xf32>
    %98 = arith.mulf %97, %96 : vector<128x1xf32>
    %99 = arith.addf %83, %90 : vector<128x1xf32>
    %100 = arith.subf %99, %98 : vector<128x1xf32>
    %101 = vector.shape_cast %100 : vector<128x1xf32> to vector<1x1x128xf32>
    %c0_32 = arith.constant 0 : index
    %c0_33 = arith.constant 0 : index
    %c0_34 = arith.constant 0 : index
    %102 = vector.load %arg6[%c0_32, %c0_33, %c0_34] : memref<1x1x128xf32, #tpu.memory_space<vmem>>, vector<1x1x128xf32>
    tpu.vector_store %arg6[%c0_32, %c0_33, %c0_34], %101 {strides = array<i32>} : memref<1x1x128xf32, #tpu.memory_space<vmem>>, vector<1x1x128xf32>,
    return
  }
  func.func @transform_0(%arg0: i32) -> (i32, i32) {
    %c0_i32 = arith.constant 0 : i32
    %c0_i32_0 = arith.constant 0 : i32
    return %arg0, %c0_i32 : i32, i32
  }
  func.func @transform_1(%arg0: i32) -> (i32, i32) {
    %c0_i32 = arith.constant 0 : i32
    %c0_i32_0 = arith.constant 0 : i32
    %c0_i32_1 = arith.constant 0 : i32
    return %c0_i32, %c0_i32_0 : i32, i32
  }
  func.func @transform_2(%arg0: i32) -> (i32, i32) {
    %c0_i32 = arith.constant 0 : i32
    %c0_i32_0 = arith.constant 0 : i32
    %c0_i32_1 = arith.constant 0 : i32
    return %c0_i32, %c0_i32_0 : i32, i32
  }
  func.func @transform_3(%arg0: i32) -> (i32, i32) {
    %c0_i32 = arith.constant 0 : i32
    %c0_i32_0 = arith.constant 0 : i32
    %c0_i32_1 = arith.constant 0 : i32
    return %c0_i32, %c0_i32_0 : i32, i32
  }
  func.func @transform_4(%arg0: i32) -> (i32, i32) {
    %c0_i32 = arith.constant 0 : i32
    %c0_i32_0 = arith.constant 0 : i32
    %c0_i32_1 = arith.constant 0 : i32
    return %c0_i32, %c0_i32_0 : i32, i32
  }
  func.func @transform_5(%arg0: i32) -> (i32, i32, i32) {
    %c0_i32 = arith.constant 0 : i32
    %c0_i32_0 = arith.constant 0 : i32
    %c0_i32_1 = arith.constant 0 : i32
    return %arg0, %c0_i32, %c0_i32_0 : i32, i32, i32
  }
}

</mosaic_0001>

<llo_original>
// kernel: tpu_custom_call.1
$region0: #{tpu_custom_call.1}
  #allocation0 [shape = 'u32[]', space=smem, size = 0x4, offset = 0x4, fixed_abs, tag = 'smem constant byte address 0x4 - core index']
  #allocation1 [shape = 'u32[144,128]{1,0:T(1,128)}', space=vmem, size = 0x12000, scoped, tag = 'internal scratch']
  %s0 = inlined_call_operand.hbm [shape: f32[128,384], index: 0, kind: input, shape index: {}]
  %s1 = inlined_call_operand.hbm [shape: bf16[256,128], index: 1, kind: input, shape index: {}]
  %s2 = inlined_call_operand.hbm [shape: f32[128,384], index: 2, kind: input, shape index: {}]
  %s3 = inlined_call_operand.hbm [shape: bf16[128,512], index: 3, kind: input, shape index: {}]
  %s4 = inlined_call_operand.hbm [shape: f32[32,512], index: 4, kind: input, shape index: {}]
  %s5 = inlined_call_operand.hbm [shape: f32[1,1,128], index: 5, kind: output, shape index: {}]
  %s6 = sld [smem:[#allocation0]]
  $region50: #{tpu_custom_call.1} parent=0
    _
  %s8 = ssub.s32 1, %s6
  %s9 = scalar_select 0, %s8, %s6
  $region1: #{tpu_custom_call.1} parent=0
    #allocation2 [shape = 'u8[196608]{0}', space=vmem, size = 0x30000, scoped, tag = 'input window, operand 0, single buffered']
    #allocation3 [shape = 's32[1]{0}', space=sflag, size = 0x4, scoped, tag = 'scoped memory for tpu_custom_call.1']
    #allocation4 [shape = 's32[1]{0}', space=sflag, size = 0x4, scoped, tag = 'scoped memory for tpu_custom_call.1']
    #allocation5 [shape = 'u8[65536]{0}', space=vmem, size = 0x10000, scoped, tag = 'input window, operand 1, single buffered']
    #allocation6 [shape = 's32[1]{0}', space=sflag, size = 0x4, scoped, tag = 'scoped memory for tpu_custom_call.1']
    #allocation7 [shape = 'u8[196608]{0}', space=vmem, size = 0x30000, scoped, tag = 'input window, operand 2, single buffered']
    #allocation8 [shape = 'u8[131072]{0}', space=vmem, size = 0x20000, scoped, tag = 'input window, operand 3, single buffered']
    #allocation9 [shape = 's32[1]{0}', space=sflag, size = 0x4, scoped, tag = 'scoped memory for tpu_custom_call.1']
    #allocation10 [shape = 'u8[65536]{0}', space=vmem, size = 0x10000, scoped, tag = 'input window, operand 4, single buffered']
    #allocation11 [shape = 'u8[512]{0}', space=vmem, size = 0x400, scoped, tag = 'output window, operand 0, single buffered']
    %10 = vsyncpa [#allocation3], 0
    %11 = vsyncpa [#allocation6], 0
    %12 = vsyncpa [#allocation9], 0
    %13 = vsyncpa [#allocation4], 0
    // Predicated region
    $region2: #{tpu_custom_call.1} parent=1 // pred_check
      _
    $region3: #{tpu_custom_call.1} parent=1 // pred_check_branch
      %15 = sbr.rel (0) target = $region5
    $region4: #{tpu_custom_call.1} parent=1 // pred_region
      %s17 = ssub.s32 6144, 6144
      %18 = vsyncadd [#allocation3], %s17
      %s19 = sshll.u32 [#allocation2], 4
      %s20 = int_to_ptr.vmem [resolvable:$true] %s19
      %25 = dma.hbm_to_vmem [thread:$0]  %s0, 6144, %s20, [#allocation3], 384, 384, 24
    $region5: #{tpu_custom_call.1} parent=1 // pred_fallthru
      _
    // Predicated region
    $region6: #{tpu_custom_call.1} parent=1 // pred_check
      _
    $region7: #{tpu_custom_call.1} parent=1 // pred_check_branch
      %27 = sbr.rel (0) target = $region9
    $region8: #{tpu_custom_call.1} parent=1 // pred_region
      %s29 = ssub.s32 2048, 2048
      %30 = vsyncadd [#allocation6], %s29
      %s31 = sshll.u32 [#allocation5], 4
      %s32 = int_to_ptr.vmem [resolvable:$true] %s31
      %37 = dma.hbm_to_vmem [thread:$0]  %s1, 2048, %s32, [#allocation6], 64, 64, 4
    $region9: #{tpu_custom_call.1} parent=1 // pred_fallthru
      _
    // Predicated region
    $region10: #{tpu_custom_call.1} parent=1 // pred_check
      _
    $region11: #{tpu_custom_call.1} parent=1 // pred_check_branch
      %39 = sbr.rel (0) target = $region13
    $region12: #{tpu_custom_call.1} parent=1 // pred_region
      %s41 = ssub.s32 6144, 6144
      %42 = vsyncadd [#allocation6], %s41
      %s43 = sshll.u32 [#allocation7], 4
      %s44 = int_to_ptr.vmem [resolvable:$true] %s43
      %49 = dma.hbm_to_vmem [thread:$0]  %s2, 6144, %s44, [#allocation6], 384, 384, 24
    $region13: #{tpu_custom_call.1} parent=1 // pred_fallthru
      _
    // Predicated region
    $region14: #{tpu_custom_call.1} parent=1 // pred_check
      _
    $region15: #{tpu_custom_call.1} parent=1 // pred_check_branch
      %51 = sbr.rel (0) target = $region17
    $region16: #{tpu_custom_call.1} parent=1 // pred_region
      %s53 = ssub.s32 4096, 4096
      %54 = vsyncadd [#allocation9], %s53
      %s55 = sshll.u32 [#allocation8], 4
      %s56 = int_to_ptr.vmem [resolvable:$true] %s55
      %61 = dma.hbm_to_vmem [thread:$0]  %s3, 4096, %s56, [#allocation9], 256, 256, 16
    $region17: #{tpu_custom_call.1} parent=1 // pred_fallthru
      _
    // Predicated region
    $region18: #{tpu_custom_call.1} parent=1 // pred_check
      _
    $region19: #{tpu_custom_call.1} parent=1 // pred_check_branch
      %63 = sbr.rel (0) target = $region21
    $region20: #{tpu_custom_call.1} parent=1 // pred_region
      %s65 = ssub.s32 2048, 2048
      %66 = vsyncadd [#allocation9], %s65
      %s67 = sshll.u32 [#allocation10], 4
      %s68 = int_to_ptr.vmem [resolvable:$true] %s67
      %73 = dma.hbm_to_vmem [thread:$0]  %s4, 2048, %s68, [#allocation9], 512, 512, 32
    $region21: #{tpu_custom_call.1} parent=1 // pred_fallthru
      _
    // Predicated region
    $region22: #{tpu_custom_call.1} parent=1 // pred_check
      _
    $region23: #{tpu_custom_call.1} parent=1 // pred_check_branch
      %75 = sbr.rel (0) target = $region25
    $region24: #{tpu_custom_call.1} parent=1 // pred_region
      %76 = dma.done [#allocation3], 6144
    $region25: #{tpu_custom_call.1} parent=1 // pred_fallthru
      _
    // Predicated region
    $region26: #{tpu_custom_call.1} parent=1 // pred_check
      _
    $region27: #{tpu_custom_call.1} parent=1 // pred_check_branch
      %78 = sbr.rel (0) target = $region29
    $region28: #{tpu_custom_call.1} parent=1 // pred_region
      %79 = dma.done [#allocation6], 2048
    $region29: #{tpu_custom_call.1} parent=1 // pred_fallthru
      _
    // Predicated region
    $region30: #{tpu_custom_call.1} parent=1 // pred_check
      _
    $region31: #{tpu_custom_call.1} parent=1 // pred_check_branch
      %81 = sbr.rel (0) target = $region33
    $region32: #{tpu_custom_call.1} parent=1 // pred_region
      %82 = dma.done [#allocation6], 6144
    $region33: #{tpu_custom_call.1} parent=1 // pred_fallthru
      _
    // Predicated region
    $region34: #{tpu_custom_call.1} parent=1 // pred_check
      _
    $region35: #{tpu_custom_call.1} parent=1 // pred_check_branch
      %84 = sbr.rel (0) target = $region37
    $region36: #{tpu_custom_call.1} parent=1 // pred_region
      %85 = dma.done [#allocation9], 4096
    $region37: #{tpu_custom_call.1} parent=1 // pred_fallthru
      _
    // Predicated region
    $region38: #{tpu_custom_call.1} parent=1 // pred_check
      _
    $region39: #{tpu_custom_call.1} parent=1 // pred_check_branch
      %87 = sbr.rel (0) target = $region41
    $region40: #{tpu_custom_call.1} parent=1 // pred_region
      %88 = dma.done [#allocation9], 2048
    $region41: #{tpu_custom_call.1} parent=1 // pred_fallthru
      _
    %v90 = vld [vmem:[#allocation2] sm:$0xff]
    %v91 = vld [vmem:[#allocation2 + $0x8] sm:$0xff]
    %v92 = vld [vmem:[#allocation2 + $0x10] sm:$0xff]
    %v93 = vld [vmem:[#allocation2 + $0x18] sm:$0xff]
    %v94 = vld [vmem:[#allocation2 + $0x20] sm:$0xff]
    %v95 = vld [vmem:[#allocation2 + $0x28] sm:$0xff]
    %v96 = vld [vmem:[#allocation2 + $0x30] sm:$0xff]
    %v97 = vld [vmem:[#allocation2 + $0x38] sm:$0xff]
    %v98 = vld [vmem:[#allocation2 + $0x40] sm:$0xff]
    %v99 = vld [vmem:[#allocation2 + $0x48] sm:$0xff]
    %v100 = vld [vmem:[#allocation2 + $0x50] sm:$0xff]
    %v101 = vld [vmem:[#allocation2 + $0x58] sm:$0xff]
    %v102 = vld [vmem:[#allocation2 + $0x60] sm:$0xff]
    %v103 = vld [vmem:[#allocation2 + $0x68] sm:$0xff]
    %v104 = vld [vmem:[#allocation2 + $0x70] sm:$0xff]
    %v105 = vld [vmem:[#allocation2 + $0x78] sm:$0xff]
    %v106 = vld [vmem:[#allocation2 + $0x80] sm:$0xff]
    %v107 = vld [vmem:[#allocation2 + $0x88] sm:$0xff]
    %v108 = vld [vmem:[#allocation2 + $0x90] sm:$0xff]
    %v109 = vld [vmem:[#allocation2 + $0x98] sm:$0xff]
    %v110 = vld [vmem:[#allocation2 + $0xa0] sm:$0xff]
    %v111 = vld [vmem:[#allocation2 + $0xa8] sm:$0xff]
    %v112 = vld [vmem:[#allocation2 + $0xb0] sm:$0xff]
    %v113 = vld [vmem:[#allocation2 + $0xb8] sm:$0xff]
    %v114 = vld [vmem:[#allocation2 + $0xc0] sm:$0xff]
    %v115 = vld [vmem:[#allocation2 + $0xc8] sm:$0xff]
    %v116 = vld [vmem:[#allocation2 + $0xd0] sm:$0xff]
    %v117 = vld [vmem:[#allocation2 + $0xd8] sm:$0xff]
    %v118 = vld [vmem:[#allocation2 + $0xe0] sm:$0xff]
    %v119 = vld [vmem:[#allocation2 + $0xe8] sm:$0xff]
    %v120 = vld [vmem:[#allocation2 + $0xf0] sm:$0xff]
    %v121 = vld [vmem:[#allocation2 + $0xf8] sm:$0xff]
    %v122 = vld [vmem:[#allocation2 + $0x100] sm:$0xff]
    %v123 = vld [vmem:[#allocation2 + $0x108] sm:$0xff]
    %v124 = vld [vmem:[#allocation2 + $0x110] sm:$0xff]
    %v125 = vld [vmem:[#allocation2 + $0x118] sm:$0xff]
    %v126 = vld [vmem:[#allocation2 + $0x120] sm:$0xff]
    %v127 = vld [vmem:[#allocation2 + $0x128] sm:$0xff]
    %v128 = vld [vmem:[#allocation2 + $0x130] sm:$0xff]
    %v129 = vld [vmem:[#allocation2 + $0x138] sm:$0xff]
    %v130 = vld [vmem:[#allocation2 + $0x140] sm:$0xff]
    %v131 = vld [vmem:[#allocation2 + $0x148] sm:$0xff]
    %v132 = vld [vmem:[#allocation2 + $0x150] sm:$0xff]
    %v133 = vld [vmem:[#allocation2 + $0x158] sm:$0xff]
    %v134 = vld [vmem:[#allocation2 + $0x160] sm:$0xff]
    %v135 = vld [vmem:[#allocation2 + $0x168] sm:$0xff]
    %v136 = vld [vmem:[#allocation2 + $0x170] sm:$0xff]
    %v137 = vld [vmem:[#allocation2 + $0x178] sm:$0xff]
    %v138 = vld [vmem:[#allocation10] sm:$0xff]
    %v139 = vld [vmem:[#allocation10 + $0x8] sm:$0xff]
    %v140 = vld [vmem:[#allocation10 + $0x20] sm:$0xff]
    %v141 = vld [vmem:[#allocation10 + $0x28] sm:$0xff]
    %v142 = vld [vmem:[#allocation10 + $0x30] sm:$0xff]
    %v143 = vld [vmem:[#allocation10 + $0x40] sm:$0xff]
    %v144 = vld [vmem:[#allocation10 + $0x48] sm:$0xff]
    %v145 = vld [vmem:[#allocation10 + $0x50] sm:$0xff]
    %v146 = vld [vmem:[#allocation10 + $0x60] sm:$0xff]
    %v147 = vld [vmem:[#allocation10 + $0x68] sm:$0xff]
    %v148 = vld [vmem:[#allocation10 + $0x70] sm:$0xff]
    %v149 = vld [vmem:[#allocation10 + $0x78] sm:$0xff]
    %v150 = vpack.c.bf16 %v93, %v90
    %v151 = vpack.c.bf16 %v94, %v91
    %v152 = vpack.c.bf16 %v99, %v96
    %v153 = vpack.c.bf16 %v100, %v97
    %v154 = vpack.c.bf16 %v105, %v102
    %v155 = vpack.c.bf16 %v106, %v103
    %v156 = vpack.c.bf16 %v111, %v108
    %v157 = vpack.c.bf16 %v112, %v109
    %v158 = vpack.c.bf16 %v117, %v114
    %v159 = vpack.c.bf16 %v118, %v115
    %v160 = vpack.c.bf16 %v123, %v120
    %v161 = vpack.c.bf16 %v124, %v121
    %v162 = vpack.c.bf16 %v129, %v126
    %v163 = vpack.c.bf16 %v130, %v127
    %v164 = vpack.c.bf16 %v135, %v132
    %v165 = vpack.c.bf16 %v136, %v133
    %v166 = vld [vmem:[#allocation5] sm:$0xf]
    %v167 = vld [vmem:[#allocation5 + $0x4] sm:$0xf]
    %v168 = vld [vmem:[#allocation5 + $0x8] sm:$0xf]
    %v169 = vld [vmem:[#allocation5 + $0xc] sm:$0xf]
    %v170 = vld [vmem:[#allocation5 + $0x10] sm:$0xf]
    %v171 = vld [vmem:[#allocation5 + $0x14] sm:$0xf]
    %v172 = vld [vmem:[#allocation5 + $0x18] sm:$0xf]
    %v173 = vld [vmem:[#allocation5 + $0x1c] sm:$0xf]
    %v174 = vld [vmem:[#allocation5 + $0x20] sm:$0xf]
    %v175 = vld [vmem:[#allocation5 + $0x24] sm:$0xf]
    %v176 = vld [vmem:[#allocation5 + $0x28] sm:$0xf]
    %v177 = vld [vmem:[#allocation5 + $0x2c] sm:$0xf]
    %v178 = vld [vmem:[#allocation5 + $0x30] sm:$0xf]
    %v179 = vld [vmem:[#allocation5 + $0x34] sm:$0xf]
    %v180 = vld [vmem:[#allocation5 + $0x38] sm:$0xf]
    %v181 = vld [vmem:[#allocation5 + $0x3c] sm:$0xf]
    %v182 = vld [vmem:[#allocation5 + $0x40] sm:$0xf]
    %v183 = vld [vmem:[#allocation5 + $0x44] sm:$0xf]
    %v184 = vld [vmem:[#allocation5 + $0x48] sm:$0xf]
    %v185 = vld [vmem:[#allocation5 + $0x4c] sm:$0xf]
    %v186 = vld [vmem:[#allocation5 + $0x50] sm:$0xf]
    %v187 = vld [vmem:[#allocation5 + $0x54] sm:$0xf]
    %v188 = vld [vmem:[#allocation5 + $0x58] sm:$0xf]
    %v189 = vld [vmem:[#allocation5 + $0x5c] sm:$0xf]
    %v190 = vld [vmem:[#allocation5 + $0x60] sm:$0xf]
    %v191 = vld [vmem:[#allocation5 + $0x64] sm:$0xf]
    %v192 = vld [vmem:[#allocation5 + $0x68] sm:$0xf]
    %v193 = vld [vmem:[#allocation5 + $0x6c] sm:$0xf]
    %v194 = vld [vmem:[#allocation5 + $0x70] sm:$0xf]
    %v195 = vld [vmem:[#allocation5 + $0x74] sm:$0xf]
    %v196 = vld [vmem:[#allocation5 + $0x78] sm:$0xf]
    %v197 = vld [vmem:[#allocation5 + $0x7c] sm:$0xf]
    %v198 = vlaneseq
    %v199 = vshrl.u32 %v198, 7
    %v200 = vsub.s32 0, %v199
    %v201 = vrot.slane %v140, %v200
    %v234 = vunpack.c.l.b16 %v166
    %v235 = vunpack.c.l.b16 %v167
    %v236 = vunpack.c.l.b16 %v168
    %v237 = vunpack.c.l.b16 %v169
    %v238 = vunpack.c.l.b16 %v170
    %v239 = vunpack.c.l.b16 %v171
    %v240 = vunpack.c.l.b16 %v172
    %v241 = vunpack.c.l.b16 %v173
    %v242 = vunpack.c.l.b16 %v174
    %v243 = vunpack.c.l.b16 %v175
    %v244 = vunpack.c.l.b16 %v176
    %v245 = vunpack.c.l.b16 %v177
    %v246 = vunpack.c.l.b16 %v178
    %v247 = vunpack.c.l.b16 %v179
    %v248 = vunpack.c.l.b16 %v180
    %v249 = vunpack.c.l.b16 %v181
    %v250 = vunpack.c.l.b16 %v182
    %v251 = vunpack.c.l.b16 %v183
    %v252 = vunpack.c.l.b16 %v184
    %v253 = vunpack.c.l.b16 %v185
    %v254 = vunpack.c.l.b16 %v186
    %v255 = vunpack.c.l.b16 %v187
    %v256 = vunpack.c.l.b16 %v188
    %v257 = vunpack.c.l.b16 %v189
    %v258 = vunpack.c.l.b16 %v190
    %v259 = vunpack.c.l.b16 %v191
    %v260 = vunpack.c.l.b16 %v192
    %v261 = vunpack.c.l.b16 %v193
    %v262 = vunpack.c.l.b16 %v194
    %v263 = vunpack.c.l.b16 %v195
    %v264 = vunpack.c.l.b16 %v196
    %v265 = vunpack.c.l.b16 %v197
    %v266 = vpack.c.b16 %v235, %v234
    %v267 = vpack.c.b16 %v237, %v236
    %v268 = vpack.c.b16 %v239, %v238
    %v269 = vpack.c.b16 %v241, %v240
    %v270 = vpack.c.b16 %v243, %v242
    %v271 = vpack.c.b16 %v245, %v244
    %v272 = vpack.c.b16 %v247, %v246
    %v273 = vpack.c.b16 %v249, %v248
    %v274 = vpack.c.b16 %v251, %v250
    %v275 = vpack.c.b16 %v253, %v252
    %v276 = vpack.c.b16 %v255, %v254
    %v277 = vpack.c.b16 %v257, %v256
    %v278 = vpack.c.b16 %v259, %v258
    %v279 = vpack.c.b16 %v261, %v260
    %v280 = vpack.c.b16 %v263, %v262
    %v281 = vpack.c.b16 %v265, %v264
    %298 = vmatprep.subr.bf16.mxu0 0
    %299 = vmatpush1.bf16.msra.mxu0 %v266
    %300 = vmatprep.subr.bf16.mxu0 0
    %301 = vmatpush1.bf16.msra.mxu0 %v267
    %302 = vmatprep.subr.bf16.mxu0 0
    %303 = vmatpush1.bf16.msra.mxu0 %v268
    %304 = vmatprep.subr.bf16.mxu0 0
    %305 = vmatpush1.bf16.msra.mxu0 %v269
    %306 = vmatprep.subr.bf16.mxu0 0
    %307 = vmatpush1.bf16.msra.mxu0 %v270
    %308 = vmatprep.subr.bf16.mxu0 0
    %309 = vmatpush1.bf16.msra.mxu0 %v271
    %310 = vmatprep.subr.bf16.mxu0 0
    %311 = vmatpush1.bf16.msra.mxu0 %v272
    %312 = vmatprep.subr.bf16.mxu0 0
    %313 = vmatpush1.bf16.msra.mxu0 %v273
    %314 = vmatprep.subr.bf16.mxu0 0
    %315 = vmatpush1.bf16.msra.mxu0 %v274
    %316 = vmatprep.subr.bf16.mxu0 0
    %317 = vmatpush1.bf16.msra.mxu0 %v275
    %318 = vmatprep.subr.bf16.mxu0 0
    %319 = vmatpush1.bf16.msra.mxu0 %v276
    %320 = vmatprep.subr.bf16.mxu0 0
    %321 = vmatpush1.bf16.msra.mxu0 %v277
    %322 = vmatprep.subr.bf16.mxu0 0
    %323 = vmatpush1.bf16.msra.mxu0 %v278
    %324 = vmatprep.subr.bf16.mxu0 0
    %325 = vmatpush1.bf16.msra.mxu0 %v279
    %326 = vmatprep.subr.bf16.mxu0 0
    %327 = vmatpush1.bf16.msra.mxu0 %v280
    %328 = vmatprep.subr.bf16.mxu0 0
    %329 = vmatpush1.bf16.msra.mxu0 %v281
    %330 = vmatprep.mubr.bf16.mxu0 %v151
    %331 = vmatmul.mubr.bf16.gmra.mrb[0].mxu0 %v150
    %v332 = vpop.f32.mrb[0].mxu0
    %v333 = vadd.f32 %v201, %v332
    %v334 = vpop.f32.mrb[0].mxu0
    %v335 = vpop.f32.mrb[0].mxu0
    %v336 = vadd.f32 %v201, %v335
    %v337 = vpop.f32.mrb[0].mxu0
    %338 = vmatprep.mubr.bf16.mxu0 %v153
    %339 = vmatmul.mubr.bf16.gmra.mrb[0].mxu0 %v152
    %v340 = vpop.f32.mrb[0].mxu0
    %v341 = vadd.f32 %v201, %v340
    %v342 = vpop.f32.mrb[0].mxu0
    %v343 = vpop.f32.mrb[0].mxu0
    %v344 = vadd.f32 %v201, %v343
    %v345 = vpop.f32.mrb[0].mxu0
    %346 = vmatprep.mubr.bf16.mxu0 %v155
    %347 = vmatmul.mubr.bf16.gmra.mrb[0].mxu0 %v154
    %v348 = vpop.f32.mrb[0].mxu0
    %v349 = vadd.f32 %v201, %v348
    %v350 = vpop.f32.mrb[0].mxu0
    %v351 = vpop.f32.mrb[0].mxu0
    %v352 = vadd.f32 %v201, %v351
    %v353 = vpop.f32.mrb[0].mxu0
    %354 = vmatprep.mubr.bf16.mxu0 %v157
    %355 = vmatmul.mubr.bf16.gmra.mrb[0].mxu0 %v156
    %v356 = vpop.f32.mrb[0].mxu0
    %v357 = vadd.f32 %v201, %v356
    %v358 = vpop.f32.mrb[0].mxu0
    %v359 = vpop.f32.mrb[0].mxu0
    %v360 = vadd.f32 %v201, %v359
    %v361 = vpop.f32.mrb[0].mxu0
    %362 = vmatprep.mubr.bf16.mxu0 %v159
    %363 = vmatmul.mubr.bf16.gmra.mrb[0].mxu0 %v158
    %v364 = vpop.f32.mrb[0].mxu0
    %v365 = vadd.f32 %v201, %v364
    %v366 = vpop.f32.mrb[0].mxu0
    %v367 = vpop.f32.mrb[0].mxu0
    %v368 = vadd.f32 %v201, %v367
    %v369 = vpop.f32.mrb[0].mxu0
    %370 = vmatprep.mubr.bf16.mxu0 %v161
    %371 = vmatmul.mubr.bf16.gmra.mrb[0].mxu0 %v160
    %v372 = vpop.f32.mrb[0].mxu0
    %v373 = vadd.f32 %v201, %v372
    %v374 = vpop.f32.mrb[0].mxu0
    %v375 = vpop.f32.mrb[0].mxu0
    %v376 = vadd.f32 %v201, %v375
    %v377 = vpop.f32.mrb[0].mxu0
    %378 = vmatprep.mubr.bf16.mxu0 %v163
    %379 = vmatmul.mubr.bf16.gmra.mrb[0].mxu0 %v162
    %v380 = vpop.f32.mrb[0].mxu0
    %v381 = vadd.f32 %v201, %v380
    %v382 = vpop.f32.mrb[0].mxu0
    %v383 = vpop.f32.mrb[0].mxu0
    %v384 = vadd.f32 %v201, %v383
    %v385 = vpop.f32.mrb[0].mxu0
    %386 = vmatprep.mubr.bf16.mxu0 %v165
    %387 = vmatmul.mubr.bf16.gmra.mrb[0].mxu0 %v164
    %v388 = vpop.f32.mrb[0].mxu0
    %v389 = vadd.f32 %v201, %v388
    %v390 = vpop.f32.mrb[0].mxu0
    %v391 = vpop.f32.mrb[0].mxu0
    %v392 = vadd.f32 %v201, %v391
    %v393 = vpop.f32.mrb[0].mxu0
    %394 = vdwg.mxu0
    %v395 = vtanh.pop %v333
    %v396 = vtanh.pop %v336
    %v397 = vtanh.pop %v341
    %v398 = vtanh.pop %v344
    %v399 = vtanh.pop %v349
    %v400 = vtanh.pop %v352
    %v401 = vtanh.pop %v357
    %v402 = vtanh.pop %v360
    %v403 = vtanh.pop %v365
    %v404 = vtanh.pop %v368
    %v405 = vtanh.pop %v373
    %v406 = vtanh.pop %v376
    %v407 = vtanh.pop %v381
    %v408 = vtanh.pop %v384
    %v409 = vtanh.pop %v389
    %v410 = vtanh.pop %v392
    %v411 = vld [vmem:[#allocation7] sm:$0xff]
    %v412 = vld [vmem:[#allocation7 + $0x8] sm:$0xff]
    %v413 = vld [vmem:[#allocation7 + $0x10] sm:$0xff]
    %v414 = vld [vmem:[#allocation7 + $0x18] sm:$0xff]
    %v415 = vld [vmem:[#allocation7 + $0x20] sm:$0xff]
    %v416 = vld [vmem:[#allocation7 + $0x28] sm:$0xff]
    %v417 = vld [vmem:[#allocation7 + $0x30] sm:$0xff]
    %v418 = vld [vmem:[#allocation7 + $0x38] sm:$0xff]
    %v419 = vld [vmem:[#allocation7 + $0x40] sm:$0xff]
    %v420 = vld [vmem:[#allocation7 + $0x48] sm:$0xff]
    %v421 = vld [vmem:[#allocation7 + $0x50] sm:$0xff]
    %v422 = vld [vmem:[#allocation7 + $0x58] sm:$0xff]
    %v423 = vld [vmem:[#allocation7 + $0x60] sm:$0xff]
    %v424 = vld [vmem:[#allocation7 + $0x68] sm:$0xff]
    %v425 = vld [vmem:[#allocation7 + $0x70] sm:$0xff]
    %v426 = vld [vmem:[#allocation7 + $0x78] sm:$0xff]
    %v427 = vld [vmem:[#allocation7 + $0x80] sm:$0xff]
    %v428 = vld [vmem:[#allocation7 + $0x88] sm:$0xff]
    %v429 = vld [vmem:[#allocation7 + $0x90] sm:$0xff]
    %v430 = vld [vmem:[#allocation7 + $0x98] sm:$0xff]
    %v431 = vld [vmem:[#allocation7 + $0xa0] sm:$0xff]
    %v432 = vld [vmem:[#allocation7 + $0xa8] sm:$0xff]
    %v433 = vld [vmem:[#allocation7 + $0xb0] sm:$0xff]
    %v434 = vld [vmem:[#allocation7 + $0xb8] sm:$0xff]
    %v435 = vld [vmem:[#allocation7 + $0xc0] sm:$0xff]
    %v436 = vld [vmem:[#allocation7 + $0xc8] sm:$0xff]
    %v437 = vld [vmem:[#allocation7 + $0xd0] sm:$0xff]
    %v438 = vld [vmem:[#allocation7 + $0xd8] sm:$0xff]
    %v439 = vld [vmem:[#allocation7 + $0xe0] sm:$0xff]
    %v440 = vld [vmem:[#allocation7 + $0xe8] sm:$0xff]
    %v441 = vld [vmem:[#allocation7 + $0xf0] sm:$0xff]
    %v442 = vld [vmem:[#allocation7 + $0xf8] sm:$0xff]
    %v443 = vld [vmem:[#allocation7 + $0x100] sm:$0xff]
    %v444 = vld [vmem:[#allocation7 + $0x108] sm:$0xff]
    %v445 = vld [vmem:[#allocation7 + $0x110] sm:$0xff]
    %v446 = vld [vmem:[#allocation7 + $0x118] sm:$0xff]
    %v447 = vld [vmem:[#allocation7 + $0x120] sm:$0xff]
    %v448 = vld [vmem:[#allocation7 + $0x128] sm:$0xff]
    %v449 = vld [vmem:[#allocation7 + $0x130] sm:$0xff]
    %v450 = vld [vmem:[#allocation7 + $0x138] sm:$0xff]
    %v451 = vld [vmem:[#allocation7 + $0x140] sm:$0xff]
    %v452 = vld [vmem:[#allocation7 + $0x148] sm:$0xff]
    %v453 = vld [vmem:[#allocation7 + $0x150] sm:$0xff]
    %v454 = vld [vmem:[#allocation7 + $0x158] sm:$0xff]
    %v455 = vld [vmem:[#allocation7 + $0x160] sm:$0xff]
    %v456 = vld [vmem:[#allocation7 + $0x168] sm:$0xff]
    %v457 = vld [vmem:[#allocation7 + $0x170] sm:$0xff]
    %v458 = vld [vmem:[#allocation7 + $0x178] sm:$0xff]
    %v459 = vlaneseq
    %v460 = vshrl.u32 %v459, 7
    %v461 = vsub.s32 0, %v460
    %v462 = vrot.slane %v143, %v461
    %v463 = vlaneseq
    %v464 = vshrl.u32 %v463, 7
    %v465 = vsub.s32 0, %v464
    %v466 = vrot.slane %v144, %v465
    %v467 = vlaneseq
    %v468 = vshrl.u32 %v467, 7
    %v469 = vsub.s32 0, %v468
    %v470 = vrot.slane %v145, %v469
    %471 = vmatprep.subr.mxu0 %v412
    %472 = vmatpush1.msra.mxu0 %v411
    %473 = vmatprep.subr.mxu0 %v415
    %474 = vmatpush1.msra.mxu0 %v414
    %475 = vmatprep.subr.mxu0 %v418
    %476 = vmatpush1.msra.mxu0 %v417
    %477 = vmatprep.subr.mxu0 %v421
    %478 = vmatpush1.msra.mxu0 %v420
    %479 = vmatprep.subr.mxu0 %v424
    %480 = vmatpush1.msra.mxu0 %v423
    %481 = vmatprep.subr.mxu0 %v427
    %482 = vmatpush1.msra.mxu0 %v426
    %483 = vmatprep.subr.mxu0 %v430
    %484 = vmatpush1.msra.mxu0 %v429
    %485 = vmatprep.subr.mxu0 %v433
    %486 = vmatpush1.msra.mxu0 %v432
    %487 = vmatprep.subr.mxu0 %v436
    %488 = vmatpush1.msra.mxu0 %v435
    %489 = vmatprep.subr.mxu0 %v439
    %490 = vmatpush1.msra.mxu0 %v438
    %491 = vmatprep.subr.mxu0 %v442
    %492 = vmatpush1.msra.mxu0 %v441
    %493 = vmatprep.subr.mxu0 %v445
    %494 = vmatpush1.msra.mxu0 %v444
    %495 = vmatprep.subr.mxu0 %v448
    %496 = vmatpush1.msra.mxu0 %v447
    %497 = vmatprep.subr.mxu0 %v451
    %498 = vmatpush1.msra.mxu0 %v450
    %499 = vmatprep.subr.mxu0 %v454
    %500 = vmatpush1.msra.mxu0 %v453
    %501 = vmatprep.subr.mxu0 %v457
    %502 = vmatpush1.msra.mxu0 %v456
    %503 = vmatprep.subr.mxu0 0.0
    %504 = vmatpush1.msra.mxu0 0.0
    %505 = vmatprep.subr.mxu0 0.0
    %506 = vmatpush1.msra.mxu0 0.0
    %507 = vmatprep.subr.mxu0 0.0
    %508 = vmatpush1.msra.mxu0 0.0
    %509 = vmatprep.subr.mxu0 0.0
    %510 = vmatpush1.msra.mxu0 0.0
    %511 = vmatprep.subr.mxu0 0.0
    %512 = vmatpush1.msra.mxu0 0.0
    %513 = vmatprep.subr.mxu0 0.0
    %514 = vmatpush1.msra.mxu0 0.0
    %515 = vmatprep.subr.mxu0 0.0
    %516 = vmatpush1.msra.mxu0 0.0
    %517 = vmatprep.subr.mxu0 0.0
    %518 = vmatpush1.msra.mxu0 0.0
    %519 = vmatprep.subr.mxu0 0.0
    %520 = vmatpush1.msra.mxu0 0.0
    %521 = vmatprep.subr.mxu0 0.0
    %522 = vmatpush1.msra.mxu0 0.0
    %523 = vmatprep.subr.mxu0 0.0
    %524 = vmatpush1.msra.mxu0 0.0
    %525 = vmatprep.subr.mxu0 0.0
    %526 = vmatpush1.msra.mxu0 0.0
    %527 = vmatprep.subr.mxu0 0.0
    %528 = vmatpush1.msra.mxu0 0.0
    %529 = vmatprep.subr.mxu0 0.0
    %530 = vmatpush1.msra.mxu0 0.0
    %531 = vmatprep.subr.mxu0 0.0
    %532 = vmatpush1.msra.mxu0 0.0
    %533 = vmatprep.subr.mxu0 0.0
    %534 = vmatpush1.msra.mxu0 0.0
    %535 = vmatprep.mubr.f32.mxu0 0.0
    %536 = vmatmul.mubr.f32.gmra.mrb[0].mxu0 %v395
    %v537 = vpop.f32.mrb[0].mxu0
    %v538 = vadd.f32 %v462, %v537
    %v539 = vpop.f32.mrb[0].mxu0
    %v540 = vadd.f32 %v466, %v539
    %541 = vmatprep.mubr.f32.mxu0 0.0
    %542 = vmatmul.mubr.f32.gmra.mrb[0].mxu0 %v396
    %v543 = vpop.f32.mrb[0].mxu0
    %v544 = vadd.f32 %v462, %v543
    %v545 = vpop.f32.mrb[0].mxu0
    %v546 = vadd.f32 %v466, %v545
    %547 = vmatprep.mubr.f32.mxu0 0.0
    %548 = vmatmul.mubr.f32.gmra.mrb[0].mxu0 %v397
    %v549 = vpop.f32.mrb[0].mxu0
    %v550 = vadd.f32 %v462, %v549
    %v551 = vpop.f32.mrb[0].mxu0
    %v552 = vadd.f32 %v466, %v551
    %553 = vmatprep.mubr.f32.mxu0 0.0
    %554 = vmatmul.mubr.f32.gmra.mrb[0].mxu0 %v398
    %v555 = vpop.f32.mrb[0].mxu0
    %v556 = vadd.f32 %v462, %v555
    %v557 = vpop.f32.mrb[0].mxu0
    %v558 = vadd.f32 %v466, %v557
    %559 = vmatprep.mubr.f32.mxu0 0.0
    %560 = vmatmul.mubr.f32.gmra.mrb[0].mxu0 %v399
    %v561 = vpop.f32.mrb[0].mxu0
    %v562 = vadd.f32 %v462, %v561
    %v563 = vpop.f32.mrb[0].mxu0
    %v564 = vadd.f32 %v466, %v563
    %565 = vmatprep.mubr.f32.mxu0 0.0
    %566 = vmatmul.mubr.f32.gmra.mrb[0].mxu0 %v400
    %v567 = vpop.f32.mrb[0].mxu0
    %v568 = vadd.f32 %v462, %v567
    %v569 = vpop.f32.mrb[0].mxu0
    %v570 = vadd.f32 %v466, %v569
    %571 = vmatprep.mubr.f32.mxu0 0.0
    %572 = vmatmul.mubr.f32.gmra.mrb[0].mxu0 %v401
    %v573 = vpop.f32.mrb[0].mxu0
    %v574 = vadd.f32 %v462, %v573
    %v575 = vpop.f32.mrb[0].mxu0
    %v576 = vadd.f32 %v466, %v575
    %577 = vmatprep.mubr.f32.mxu0 0.0
    %578 = vmatmul.mubr.f32.gmra.mrb[0].mxu0 %v402
    %v579 = vpop.f32.mrb[0].mxu0
    %v580 = vadd.f32 %v462, %v579
    %v581 = vpop.f32.mrb[0].mxu0
    %v582 = vadd.f32 %v466, %v581
    %583 = vmatprep.mubr.f32.mxu0 0.0
    %584 = vmatmul.mubr.f32.gmra.mrb[0].mxu0 %v403
    %v585 = vpop.f32.mrb[0].mxu0
    %v586 = vadd.f32 %v462, %v585
    %v587 = vpop.f32.mrb[0].mxu0
    %v588 = vadd.f32 %v466, %v587
    %589 = vmatprep.mubr.f32.mxu0 0.0
    %590 = vmatmul.mubr.f32.gmra.mrb[0].mxu0 %v404
    %v591 = vpop.f32.mrb[0].mxu0
    %v592 = vadd.f32 %v462, %v591
    %v593 = vpop.f32.mrb[0].mxu0
    %v594 = vadd.f32 %v466, %v593
    %595 = vmatprep.mubr.f32.mxu0 0.0
    %596 = vmatmul.mubr.f32.gmra.mrb[0].mxu0 %v405
    %v597 = vpop.f32.mrb[0].mxu0
    %v598 = vadd.f32 %v462, %v597
    %v599 = vpop.f32.mrb[0].mxu0
    %v600 = vadd.f32 %v466, %v599
    %601 = vmatprep.mubr.f32.mxu0 0.0
    %602 = vmatmul.mubr.f32.gmra.mrb[0].mxu0 %v406
    %v603 = vpop.f32.mrb[0].mxu0
    %v604 = vadd.f32 %v462, %v603
    %v605 = vpop.f32.mrb[0].mxu0
    %v606 = vadd.f32 %v466, %v605
    %607 = vmatprep.mubr.f32.mxu0 0.0
    %608 = vmatmul.mubr.f32.gmra.mrb[0].mxu0 %v407
    %v609 = vpop.f32.mrb[0].mxu0
    %v610 = vadd.f32 %v462, %v609
    %v611 = vpop.f32.mrb[0].mxu0
    %v612 = vadd.f32 %v466, %v611
    %613 = vmatprep.mubr.f32.mxu0 0.0
    %614 = vmatmul.mubr.f32.gmra.mrb[0].mxu0 %v408
    %v615 = vpop.f32.mrb[0].mxu0
    %v616 = vadd.f32 %v462, %v615
    %v617 = vpop.f32.mrb[0].mxu0
    %v618 = vadd.f32 %v466, %v617
    %619 = vmatprep.mubr.f32.mxu0 0.0
    %620 = vmatmul.mubr.f32.gmra.mrb[0].mxu0 %v409
    %v621 = vpop.f32.mrb[0].mxu0
    %v622 = vadd.f32 %v462, %v621
    %v623 = vpop.f32.mrb[0].mxu0
    %v624 = vadd.f32 %v466, %v623
    %625 = vmatprep.mubr.f32.mxu0 0.0
    %626 = vmatmul.mubr.f32.gmra.mrb[0].mxu0 %v410
    %v627 = vpop.f32.mrb[0].mxu0
    %v628 = vadd.f32 %v462, %v627
    %v629 = vpop.f32.mrb[0].mxu0
    %v630 = vadd.f32 %v466, %v629
    %631 = vdwg.mxu0
    %632 = vmatprep.subr.mxu0 0.0
    %633 = vmatpush1.msra.mxu0 %v413
    %634 = vmatprep.subr.mxu0 0.0
    %635 = vmatpush1.msra.mxu0 %v416
    %636 = vmatprep.subr.mxu0 0.0
    %637 = vmatpush1.msra.mxu0 %v419
    %638 = vmatprep.subr.mxu0 0.0
    %639 = vmatpush1.msra.mxu0 %v422
    %640 = vmatprep.subr.mxu0 0.0
    %641 = vmatpush1.msra.mxu0 %v425
    %642 = vmatprep.subr.mxu0 0.0
    %643 = vmatpush1.msra.mxu0 %v428
    %644 = vmatprep.subr.mxu0 0.0
    %645 = vmatpush1.msra.mxu0 %v431
    %646 = vmatprep.subr.mxu0 0.0
    %647 = vmatpush1.msra.mxu0 %v434
    %648 = vmatprep.subr.mxu0 0.0
    %649 = vmatpush1.msra.mxu0 %v437
    %650 = vmatprep.subr.mxu0 0.0
    %651 = vmatpush1.msra.mxu0 %v440
    %652 = vmatprep.subr.mxu0 0.0
    %653 = vmatpush1.msra.mxu0 %v443
    %654 = vmatprep.subr.mxu0 0.0
    %655 = vmatpush1.msra.mxu0 %v446
    %656 = vmatprep.subr.mxu0 0.0
    %657 = vmatpush1.msra.mxu0 %v449
    %658 = vmatprep.subr.mxu0 0.0
    %659 = vmatpush1.msra.mxu0 %v452
    %660 = vmatprep.subr.mxu0 0.0
    %661 = vmatpush1.msra.mxu0 %v455
    %662 = vmatprep.subr.mxu0 0.0
    %663 = vmatpush1.msra.mxu0 %v458
    %664 = vmatprep.subr.mxu0 0.0
    %665 = vmatpush1.msra.mxu0 0.0
    %666 = vmatprep.subr.mxu0 0.0
    %667 = vmatpush1.msra.mxu0 0.0
    %668 = vmatprep.subr.mxu0 0.0
    %669 = vmatpush1.msra.mxu0 0.0
    %670 = vmatprep.subr.mxu0 0.0
    %671 = vmatpush1.msra.mxu0 0.0
    %672 = vmatprep.subr.mxu0 0.0
    %673 = vmatpush1.msra.mxu0 0.0
    %674 = vmatprep.subr.mxu0 0.0
    %675 = vmatpush1.msra.mxu0 0.0
    %676 = vmatprep.subr.mxu0 0.0
    %677 = vmatpush1.msra.mxu0 0.0
    %678 = vmatprep.subr.mxu0 0.0
    %679 = vmatpush1.msra.mxu0 0.0
    %680 = vmatprep.subr.mxu0 0.0
    %681 = vmatpush1.msra.mxu0 0.0
    %682 = vmatprep.subr.mxu0 0.0
    %683 = vmatpush1.msra.mxu0 0.0
    %684 = vmatprep.subr.mxu0 0.0
    %685 = vmatpush1.msra.mxu0 0.0
    %686 = vmatprep.subr.mxu0 0.0
    %687 = vmatpush1.msra.mxu0 0.0
    %688 = vmatprep.subr.mxu0 0.0
    %689 = vmatpush1.msra.mxu0 0.0
    %690 = vmatprep.subr.mxu0 0.0
    %691 = vmatpush1.msra.mxu0 0.0
    %692 = vmatprep.subr.mxu0 0.0
    %693 = vmatpush1.msra.mxu0 0.0
    %694 = vmatprep.subr.mxu0 0.0
    %695 = vmatpush1.msra.mxu0 0.0
    %696 = vmatprep.mubr.f32.mxu0 0.0
    %697 = vmatmul.mubr.f32.gmra.mrb[0].mxu0 %v395
    %v698 = vpop.f32.mrb[0].mxu0
    %v699 = vadd.f32 %v470, %v698
    %v700 = vpop.f32.mrb[0].mxu0
    %701 = vmatprep.mubr.f32.mxu0 0.0
    %702 = vmatmul.mubr.f32.gmra.mrb[0].mxu0 %v396
    %v703 = vpop.f32.mrb[0].mxu0
    %v704 = vadd.f32 %v470, %v703
    %v705 = vpop.f32.mrb[0].mxu0
    %706 = vmatprep.mubr.f32.mxu0 0.0
    %707 = vmatmul.mubr.f32.gmra.mrb[0].mxu0 %v397
    %v708 = vpop.f32.mrb[0].mxu0
    %v709 = vadd.f32 %v470, %v708
    %v710 = vpop.f32.mrb[0].mxu0
    %711 = vmatprep.mubr.f32.mxu0 0.0
    %712 = vmatmul.mubr.f32.gmra.mrb[0].mxu0 %v398
    %v713 = vpop.f32.mrb[0].mxu0
    %v714 = vadd.f32 %v470, %v713
    %v715 = vpop.f32.mrb[0].mxu0
    %716 = vmatprep.mubr.f32.mxu0 0.0
    %717 = vmatmul.mubr.f32.gmra.mrb[0].mxu0 %v399
    %v718 = vpop.f32.mrb[0].mxu0
    %v719 = vadd.f32 %v470, %v718
    %v720 = vpop.f32.mrb[0].mxu0
    %721 = vmatprep.mubr.f32.mxu0 0.0
    %722 = vmatmul.mubr.f32.gmra.mrb[0].mxu0 %v400
    %v723 = vpop.f32.mrb[0].mxu0
    %v724 = vadd.f32 %v470, %v723
    %v725 = vpop.f32.mrb[0].mxu0
    %726 = vmatprep.mubr.f32.mxu0 0.0
    %727 = vmatmul.mubr.f32.gmra.mrb[0].mxu0 %v401
    %v728 = vpop.f32.mrb[0].mxu0
    %v729 = vadd.f32 %v470, %v728
    %v730 = vpop.f32.mrb[0].mxu0
    %731 = vmatprep.mubr.f32.mxu0 0.0
    %732 = vmatmul.mubr.f32.gmra.mrb[0].mxu0 %v402
    %v733 = vpop.f32.mrb[0].mxu0
    %v734 = vadd.f32 %v470, %v733
    %v735 = vpop.f32.mrb[0].mxu0
    %736 = vmatprep.mubr.f32.mxu0 0.0
    %737 = vmatmul.mubr.f32.gmra.mrb[0].mxu0 %v403
    %v738 = vpop.f32.mrb[0].mxu0
    %v739 = vadd.f32 %v470, %v738
    %v740 = vpop.f32.mrb[0].mxu0
    %741 = vmatprep.mubr.f32.mxu0 0.0
    %742 = vmatmul.mubr.f32.gmra.mrb[0].mxu0 %v404
    %v743 = vpop.f32.mrb[0].mxu0
    %v744 = vadd.f32 %v470, %v743
    %v745 = vpop.f32.mrb[0].mxu0
    %746 = vmatprep.mubr.f32.mxu0 0.0
    %747 = vmatmul.mubr.f32.gmra.mrb[0].mxu0 %v405
    %v748 = vpop.f32.mrb[0].mxu0
    %v749 = vadd.f32 %v470, %v748
    %v750 = vpop.f32.mrb[0].mxu0
    %751 = vmatprep.mubr.f32.mxu0 0.0
    %752 = vmatmul.mubr.f32.gmra.mrb[0].mxu0 %v406
    %v753 = vpop.f32.mrb[0].mxu0
    %v754 = vadd.f32 %v470, %v753
    %v755 = vpop.f32.mrb[0].mxu0
    %756 = vmatprep.mubr.f32.mxu0 0.0
    %757 = vmatmul.mubr.f32.gmra.mrb[0].mxu0 %v407
    %v758 = vpop.f32.mrb[0].mxu0
    %v759 = vadd.f32 %v470, %v758
    %v760 = vpop.f32.mrb[0].mxu0
    %761 = vmatprep.mubr.f32.mxu0 0.0
    %762 = vmatmul.mubr.f32.gmra.mrb[0].mxu0 %v408
    %v763 = vpop.f32.mrb[0].mxu0
    %v764 = vadd.f32 %v470, %v763
    %v765 = vpop.f32.mrb[0].mxu0
    %766 = vmatprep.mubr.f32.mxu0 0.0
    %767 = vmatmul.mubr.f32.gmra.mrb[0].mxu0 %v409
    %v768 = vpop.f32.mrb[0].mxu0
    %v769 = vadd.f32 %v470, %v768
    %v770 = vpop.f32.mrb[0].mxu0
    %771 = vmatprep.mubr.f32.mxu0 0.0
    %772 = vmatmul.mubr.f32.gmra.mrb[0].mxu0 %v410
    %v773 = vpop.f32.mrb[0].mxu0
    %v774 = vadd.f32 %v470, %v773
    %v775 = vpop.f32.mrb[0].mxu0
    %776 = vdwg.mxu0
    %v777 = vmul.f32 %v540, 0.5
    %v778 = vmul.f32 %v546, 0.5
    %v779 = vmul.f32 %v552, 0.5
    %v780 = vmul.f32 %v558, 0.5
    %v781 = vmul.f32 %v564, 0.5
    %v782 = vmul.f32 %v570, 0.5
    %v783 = vmul.f32 %v576, 0.5
    %v784 = vmul.f32 %v582, 0.5
    %v785 = vmul.f32 %v588, 0.5
    %v786 = vmul.f32 %v594, 0.5
    %v787 = vmul.f32 %v600, 0.5
    %v788 = vmul.f32 %v606, 0.5
    %v789 = vmul.f32 %v612, 0.5
    %v790 = vmul.f32 %v618, 0.5
    %v791 = vmul.f32 %v624, 0.5
    %v792 = vmul.f32 %v630, 0.5
    %v793 = vmul.f32 %v777, 1.442695
    %v794 = vpow.pop %v793
    %v795 = vmul.f32 %v778, 1.442695
    %v796 = vpow.pop %v795
    %v797 = vmul.f32 %v779, 1.442695
    %v798 = vpow.pop %v797
    %v799 = vmul.f32 %v780, 1.442695
    %v800 = vpow.pop %v799
    %v801 = vmul.f32 %v781, 1.442695
    %v802 = vpow.pop %v801
    %v803 = vmul.f32 %v782, 1.442695
    %v804 = vpow.pop %v803
    %v805 = vmul.f32 %v783, 1.442695
    %v806 = vpow.pop %v805
    %v807 = vmul.f32 %v784, 1.442695
    %v808 = vpow.pop %v807
    %v809 = vmul.f32 %v785, 1.442695
    %v810 = vpow.pop %v809
    %v811 = vmul.f32 %v786, 1.442695
    %v812 = vpow.pop %v811
    %v813 = vmul.f32 %v787, 1.442695
    %v814 = vpow.pop %v813
    %v815 = vmul.f32 %v788, 1.442695
    %v816 = vpow.pop %v815
    %v817 = vmul.f32 %v789, 1.442695
    %v818 = vpow.pop %v817
    %v819 = vmul.f32 %v790, 1.442695
    %v820 = vpow.pop %v819
    %v821 = vmul.f32 %v791, 1.442695
    %v822 = vpow.pop %v821
    %v823 = vmul.f32 %v792, 1.442695
    %v824 = vpow.pop %v823
    %v825 = vmul.f32 %v92, %v794
    %v826 = vmul.f32 %v95, %v796
    %v827 = vmul.f32 %v98, %v798
    %v828 = vmul.f32 %v101, %v800
    %v829 = vmul.f32 %v104, %v802
    %v830 = vmul.f32 %v107, %v804
    %v831 = vmul.f32 %v110, %v806
    %v832 = vmul.f32 %v113, %v808
    %v833 = vmul.f32 %v116, %v810
    %v834 = vmul.f32 %v119, %v812
    %v835 = vmul.f32 %v122, %v814
    %v836 = vmul.f32 %v125, %v816
    %v837 = vmul.f32 %v128, %v818
    %v838 = vmul.f32 %v131, %v820
    %v839 = vmul.f32 %v134, %v822
    %v840 = vmul.f32 %v137, %v824
    %v841 = vadd.f32 %v538, %v825
    %v842 = vadd.f32 %v544, %v826
    %v843 = vadd.f32 %v550, %v827
    %v844 = vadd.f32 %v556, %v828
    %v845 = vadd.f32 %v562, %v829
    %v846 = vadd.f32 %v568, %v830
    %v847 = vadd.f32 %v574, %v831
    %v848 = vadd.f32 %v580, %v832
    %v849 = vadd.f32 %v586, %v833
    %v850 = vadd.f32 %v592, %v834
    %v851 = vadd.f32 %v598, %v835
    %v852 = vadd.f32 %v604, %v836
    %v853 = vadd.f32 %v610, %v837
    %v854 = vadd.f32 %v616, %v838
    %v855 = vadd.f32 %v622, %v839
    %v856 = vadd.f32 %v628, %v840
    %v857 = vmul.f32 %v699, %v841
    %v858 = vmul.f32 %v704, %v842
    %v859 = vmul.f32 %v709, %v843
    %v860 = vmul.f32 %v714, %v844
    %v861 = vmul.f32 %v719, %v845
    %v862 = vmul.f32 %v724, %v846
    %v863 = vmul.f32 %v729, %v847
    %v864 = vmul.f32 %v734, %v848
    %v865 = vmul.f32 %v739, %v849
    %v866 = vmul.f32 %v744, %v850
    %v867 = vmul.f32 %v749, %v851
    %v868 = vmul.f32 %v754, %v852
    %v869 = vmul.f32 %v759, %v853
    %v870 = vmul.f32 %v764, %v854
    %v871 = vmul.f32 %v769, %v855
    %v872 = vmul.f32 %v774, %v856
    %vm873 = vcmask 64512
    %v874 = vsel %vm873, %v857, 0.0
    %875 = vadd.xlane.f32.xlu0 %v874
    %v876 = vpop.xlane.xlu0 %875
    %v877 = vsel %vm873, %v858, 0.0
    %878 = vadd.xlane.f32.xlu0 %v877
    %v879 = vpop.xlane.xlu0 %878
    %v880 = vsel %vm873, %v859, 0.0
    %881 = vadd.xlane.f32.xlu0 %v880
    %v882 = vpop.xlane.xlu0 %881
    %v883 = vsel %vm873, %v860, 0.0
    %884 = vadd.xlane.f32.xlu0 %v883
    %v885 = vpop.xlane.xlu0 %884
    %v886 = vsel %vm873, %v861, 0.0
    %887 = vadd.xlane.f32.xlu0 %v886
    %v888 = vpop.xlane.xlu0 %887
    %v889 = vsel %vm873, %v862, 0.0
    %890 = vadd.xlane.f32.xlu0 %v889
    %v891 = vpop.xlane.xlu0 %890
    %v892 = vsel %vm873, %v863, 0.0
    %893 = vadd.xlane.f32.xlu0 %v892
    %v894 = vpop.xlane.xlu0 %893
    %v895 = vsel %vm873, %v864, 0.0
    %896 = vadd.xlane.f32.xlu0 %v895
    %v897 = vpop.xlane.xlu0 %896
    %v898 = vsel %vm873, %v865, 0.0
    %899 = vadd.xlane.f32.xlu0 %v898
    %v900 = vpop.xlane.xlu0 %899
    %v901 = vsel %vm873, %v866, 0.0
    %902 = vadd.xlane.f32.xlu0 %v901
    %v903 = vpop.xlane.xlu0 %902
    %v904 = vsel %vm873, %v867, 0.0
    %905 = vadd.xlane.f32.xlu0 %v904
    %v906 = vpop.xlane.xlu0 %905
    %v907 = vsel %vm873, %v868, 0.0
    %908 = vadd.xlane.f32.xlu0 %v907
    %v909 = vpop.xlane.xlu0 %908
    %v910 = vsel %vm873, %v869, 0.0
    %911 = vadd.xlane.f32.xlu0 %v910
    %v912 = vpop.xlane.xlu0 %911
    %v913 = vsel %vm873, %v870, 0.0
    %914 = vadd.xlane.f32.xlu0 %v913
    %v915 = vpop.xlane.xlu0 %914
    %v916 = vsel %vm873, %v871, 0.0
    %917 = vadd.xlane.f32.xlu0 %v916
    %v918 = vpop.xlane.xlu0 %917
    %v919 = vsel %vm873, %v872, 0.0
    %920 = vadd.xlane.f32.xlu0 %v919
    %v921 = vpop.xlane.xlu0 %920
    %v922 = vmul.f32 %v699, %v699
    %v923 = vmul.f32 %v704, %v704
    %v924 = vmul.f32 %v709, %v709
    %v925 = vmul.f32 %v714, %v714
    %v926 = vmul.f32 %v719, %v719
    %v927 = vmul.f32 %v724, %v724
    %v928 = vmul.f32 %v729, %v729
    %v929 = vmul.f32 %v734, %v734
    %v930 = vmul.f32 %v739, %v739
    %v931 = vmul.f32 %v744, %v744
    %v932 = vmul.f32 %v749, %v749
    %v933 = vmul.f32 %v754, %v754
    %v934 = vmul.f32 %v759, %v759
    %v935 = vmul.f32 %v764, %v764
    %v936 = vmul.f32 %v769, %v769
    %v937 = vmul.f32 %v774, %v774
    %v938 = vsel %vm873, %v922, 0.0
    %939 = vadd.xlane.f32.xlu0 %v938
    %v940 = vpop.xlane.xlu0 %939
    %v941 = vsel %vm873, %v923, 0.0
    %942 = vadd.xlane.f32.xlu0 %v941
    %v943 = vpop.xlane.xlu0 %942
    %v944 = vsel %vm873, %v924, 0.0
    %945 = vadd.xlane.f32.xlu0 %v944
    %v946 = vpop.xlane.xlu0 %945
    %v947 = vsel %vm873, %v925, 0.0
    %948 = vadd.xlane.f32.xlu0 %v947
    %v949 = vpop.xlane.xlu0 %948
    %v950 = vsel %vm873, %v926, 0.0
    %951 = vadd.xlane.f32.xlu0 %v950
    %v952 = vpop.xlane.xlu0 %951
    %v953 = vsel %vm873, %v927, 0.0
    %954 = vadd.xlane.f32.xlu0 %v953
    %v955 = vpop.xlane.xlu0 %954
    %v956 = vsel %vm873, %v928, 0.0
    %957 = vadd.xlane.f32.xlu0 %v956
    %v958 = vpop.xlane.xlu0 %957
    %v959 = vsel %vm873, %v929, 0.0
    %960 = vadd.xlane.f32.xlu0 %v959
    %v961 = vpop.xlane.xlu0 %960
    %v962 = vsel %vm873, %v930, 0.0
    %963 = vadd.xlane.f32.xlu0 %v962
    %v964 = vpop.xlane.xlu0 %963
    %v965 = vsel %vm873, %v931, 0.0
    %966 = vadd.xlane.f32.xlu0 %v965
    %v967 = vpop.xlane.xlu0 %966
    %v968 = vsel %vm873, %v932, 0.0
    %969 = vadd.xlane.f32.xlu0 %v968
    %v970 = vpop.xlane.xlu0 %969
    %v971 = vsel %vm873, %v933, 0.0
    %972 = vadd.xlane.f32.xlu0 %v971
    %v973 = vpop.xlane.xlu0 %972
    %v974 = vsel %vm873, %v934, 0.0
    %975 = vadd.xlane.f32.xlu0 %v974
    %v976 = vpop.xlane.xlu0 %975
    %v977 = vsel %vm873, %v935, 0.0
    %978 = vadd.xlane.f32.xlu0 %v977
    %v979 = vpop.xlane.xlu0 %978
    %v980 = vsel %vm873, %v936, 0.0
    %981 = vadd.xlane.f32.xlu0 %v980
    %v982 = vpop.xlane.xlu0 %981
    %v983 = vsel %vm873, %v937, 0.0
    %984 = vadd.xlane.f32.xlu0 %v983
    %v985 = vpop.xlane.xlu0 %984
    %v986 = vadd.f32 %v940, 1e-12
    %v987 = vadd.f32 %v943, 1e-12
    %v988 = vadd.f32 %v946, 1e-12
    %v989 = vadd.f32 %v949, 1e-12
    %v990 = vadd.f32 %v952, 1e-12
    %v991 = vadd.f32 %v955, 1e-12
    %v992 = vadd.f32 %v958, 1e-12
    %v993 = vadd.f32 %v961, 1e-12
    %v994 = vadd.f32 %v964, 1e-12
    %v995 = vadd.f32 %v967, 1e-12
    %v996 = vadd.f32 %v970, 1e-12
    %v997 = vadd.f32 %v973, 1e-12
    %v998 = vadd.f32 %v976, 1e-12
    %v999 = vadd.f32 %v979, 1e-12
    %v1000 = vadd.f32 %v982, 1e-12
    %v1001 = vadd.f32 %v985, 1e-12
    %v1002 = vmul.f32 %v699, 2.0
    %v1003 = vmul.f32 %v704, 2.0
    %v1004 = vmul.f32 %v709, 2.0
    %v1005 = vmul.f32 %v714, 2.0
    %v1006 = vmul.f32 %v719, 2.0
    %v1007 = vmul.f32 %v724, 2.0
    %v1008 = vmul.f32 %v729, 2.0
    %v1009 = vmul.f32 %v734, 2.0
    %v1010 = vmul.f32 %v739, 2.0
    %v1011 = vmul.f32 %v744, 2.0
    %v1012 = vmul.f32 %v749, 2.0
    %v1013 = vmul.f32 %v754, 2.0
    %v1014 = vmul.f32 %v759, 2.0
    %v1015 = vmul.f32 %v764, 2.0
    %v1016 = vmul.f32 %v769, 2.0
    %v1017 = vmul.f32 %v774, 2.0
    %v1018 = vrcp.pop %v986
    %v1019 = vmul.f32 %v876, %v1018
    %v1020 = vrcp.pop %v987
    %v1021 = vmul.f32 %v879, %v1020
    %v1022 = vrcp.pop %v988
    %v1023 = vmul.f32 %v882, %v1022
    %v1024 = vrcp.pop %v989
    %v1025 = vmul.f32 %v885, %v1024
    %v1026 = vrcp.pop %v990
    %v1027 = vmul.f32 %v888, %v1026
    %v1028 = vrcp.pop %v991
    %v1029 = vmul.f32 %v891, %v1028
    %v1030 = vrcp.pop %v992
    %v1031 = vmul.f32 %v894, %v1030
    %v1032 = vrcp.pop %v993
    %v1033 = vmul.f32 %v897, %v1032
    %v1034 = vrcp.pop %v994
    %v1035 = vmul.f32 %v900, %v1034
    %v1036 = vrcp.pop %v995
    %v1037 = vmul.f32 %v903, %v1036
    %v1038 = vrcp.pop %v996
    %v1039 = vmul.f32 %v906, %v1038
    %v1040 = vrcp.pop %v997
    %v1041 = vmul.f32 %v909, %v1040
    %v1042 = vrcp.pop %v998
    %v1043 = vmul.f32 %v912, %v1042
    %v1044 = vrcp.pop %v999
    %v1045 = vmul.f32 %v915, %v1044
    %v1046 = vrcp.pop %v1000
    %v1047 = vmul.f32 %v918, %v1046
    %v1048 = vrcp.pop %v1001
    %v1049 = vmul.f32 %v921, %v1048
    %v1050 = vmul.f32 %v1002, %v1019
    %v1051 = vmul.f32 %v1003, %v1021
    %v1052 = vmul.f32 %v1004, %v1023
    %v1053 = vmul.f32 %v1005, %v1025
    %v1054 = vmul.f32 %v1006, %v1027
    %v1055 = vmul.f32 %v1007, %v1029
    %v1056 = vmul.f32 %v1008, %v1031
    %v1057 = vmul.f32 %v1009, %v1033
    %v1058 = vmul.f32 %v1010, %v1035
    %v1059 = vmul.f32 %v1011, %v1037
    %v1060 = vmul.f32 %v1012, %v1039
    %v1061 = vmul.f32 %v1013, %v1041
    %v1062 = vmul.f32 %v1014, %v1043
    %v1063 = vmul.f32 %v1015, %v1045
    %v1064 = vmul.f32 %v1016, %v1047
    %v1065 = vmul.f32 %v1017, %v1049
    %v1066 = vsub.f32 %v841, %v1050
    %v1067 = vsub.f32 %v842, %v1051
    %v1068 = vsub.f32 %v843, %v1052
    %v1069 = vsub.f32 %v844, %v1053
    %v1070 = vsub.f32 %v845, %v1054
    %v1071 = vsub.f32 %v846, %v1055
    %v1072 = vsub.f32 %v847, %v1056
    %v1073 = vsub.f32 %v848, %v1057
    %v1074 = vsub.f32 %v849, %v1058
    %v1075 = vsub.f32 %v850, %v1059
    %v1076 = vsub.f32 %v851, %v1060
    %v1077 = vsub.f32 %v852, %v1061
    %v1078 = vsub.f32 %v853, %v1062
    %v1079 = vsub.f32 %v854, %v1063
    %v1080 = vsub.f32 %v855, %v1064
    %v1081 = vsub.f32 %v856, %v1065
    %v1082 = vlaneseq
    %v1083 = vshrl.u32 %v1082, 7
    %v1084 = vsub.s32 0, %v1083
    %v1085 = vrot.slane %v142, %v1084
    %v1087 = vsel %vm873, %v699, 0
    %v1090 = vsel %vm873, %v704, 0
    %v1093 = vsel %vm873, %v709, 0
    %v1096 = vsel %vm873, %v714, 0
    %v1099 = vsel %vm873, %v719, 0
    %v1102 = vsel %vm873, %v724, 0
    %v1105 = vsel %vm873, %v729, 0
    %v1108 = vsel %vm873, %v734, 0
    %v1111 = vsel %vm873, %v739, 0
    %v1114 = vsel %vm873, %v744, 0
    %v1117 = vsel %vm873, %v749, 0
    %v1120 = vsel %vm873, %v754, 0
    %v1123 = vsel %vm873, %v759, 0
    %v1126 = vsel %vm873, %v764, 0
    %v1129 = vsel %vm873, %v769, 0
    %v1132 = vsel %vm873, %v774, 0
    %1134 = vmatprep.subr.mxu0 0.0
    %1135 = vmatpush1.msra.mxu0 %v139
    %1136 = vmatprep.subr.mxu0 0.0
    %1137 = vmatpush1.msra.mxu0 0.0
    %1138 = vmatprep.subr.mxu0 0.0
    %1139 = vmatpush1.msra.mxu0 0.0
    %1140 = vmatprep.subr.mxu0 0.0
    %1141 = vmatpush1.msra.mxu0 0.0
    %1142 = vmatprep.subr.mxu0 0.0
    %1143 = vmatpush1.msra.mxu0 0.0
    %1144 = vmatprep.subr.mxu0 0.0
    %1145 = vmatpush1.msra.mxu0 0.0
    %1146 = vmatprep.subr.mxu0 0.0
    %1147 = vmatpush1.msra.mxu0 0.0
    %1148 = vmatprep.subr.mxu0 0.0
    %1149 = vmatpush1.msra.mxu0 0.0
    %1150 = vmatprep.subr.mxu0 0.0
    %1151 = vmatpush1.msra.mxu0 0.0
    %1152 = vmatprep.subr.mxu0 0.0
    %1153 = vmatpush1.msra.mxu0 0.0
    %1154 = vmatprep.subr.mxu0 0.0
    %1155 = vmatpush1.msra.mxu0 0.0
    %1156 = vmatprep.subr.mxu0 0.0
    %1157 = vmatpush1.msra.mxu0 0.0
    %1158 = vmatprep.subr.mxu0 0.0
    %1159 = vmatpush1.msra.mxu0 0.0
    %1160 = vmatprep.subr.mxu0 0.0
    %1161 = vmatpush1.msra.mxu0 0.0
    %1162 = vmatprep.subr.mxu0 0.0
    %1163 = vmatpush1.msra.mxu0 0.0
    %1164 = vmatprep.subr.mxu0 0.0
    %1165 = vmatpush1.msra.mxu0 0.0
    %1166 = vmatprep.subr.mxu0 0.0
    %1167 = vmatpush1.msra.mxu0 0.0
    %1168 = vmatprep.subr.mxu0 0.0
    %1169 = vmatpush1.msra.mxu0 0.0
    %1170 = vmatprep.subr.mxu0 0.0
    %1171 = vmatpush1.msra.mxu0 0.0
    %1172 = vmatprep.subr.mxu0 0.0
    %1173 = vmatpush1.msra.mxu0 0.0
    %1174 = vmatprep.subr.mxu0 0.0
    %1175 = vmatpush1.msra.mxu0 0.0
    %1176 = vmatprep.subr.mxu0 0.0
    %1177 = vmatpush1.msra.mxu0 0.0
    %1178 = vmatprep.subr.mxu0 0.0
    %1179 = vmatpush1.msra.mxu0 0.0
    %1180 = vmatprep.subr.mxu0 0.0
    %1181 = vmatpush1.msra.mxu0 0.0
    %1182 = vmatprep.subr.mxu0 0.0
    %1183 = vmatpush1.msra.mxu0 0.0
    %1184 = vmatprep.subr.mxu0 0.0
    %1185 = vmatpush1.msra.mxu0 0.0
    %1186 = vmatprep.subr.mxu0 0.0
    %1187 = vmatpush1.msra.mxu0 0.0
    %1188 = vmatprep.subr.mxu0 0.0
    %1189 = vmatpush1.msra.mxu0 0.0
    %1190 = vmatprep.subr.mxu0 0.0
    %1191 = vmatpush1.msra.mxu0 0.0
    %1192 = vmatprep.subr.mxu0 0.0
    %1193 = vmatpush1.msra.mxu0 0.0
    %1194 = vmatprep.subr.mxu0 0.0
    %1195 = vmatpush1.msra.mxu0 0.0
    %1196 = vmatprep.subr.mxu0 0.0
    %1197 = vmatpush1.msra.mxu0 0.0
    %1198 = vmatprep.mubr.f32.mxu0 0.0
    %1199 = vmatmul.mubr.f32.gmra.mrb[0].mxu0 %v1087
    %v1200 = vpop.f32.mrb[0].mxu0
    %v1201 = vadd.f32 %v1085, %v1200
    %v1202 = vpop.f32.mrb[0].mxu0
    %1203 = vmatprep.mubr.f32.mxu0 0.0
    %1204 = vmatmul.mubr.f32.gmra.mrb[0].mxu0 %v1090
    %v1205 = vpop.f32.mrb[0].mxu0
    %v1206 = vadd.f32 %v1085, %v1205
    %v1207 = vpop.f32.mrb[0].mxu0
    %1208 = vmatprep.mubr.f32.mxu0 0.0
    %1209 = vmatmul.mubr.f32.gmra.mrb[0].mxu0 %v1093
    %v1210 = vpop.f32.mrb[0].mxu0
    %v1211 = vadd.f32 %v1085, %v1210
    %v1212 = vpop.f32.mrb[0].mxu0
    %1213 = vmatprep.mubr.f32.mxu0 0.0
    %1214 = vmatmul.mubr.f32.gmra.mrb[0].mxu0 %v1096
    %v1215 = vpop.f32.mrb[0].mxu0
    %v1216 = vadd.f32 %v1085, %v1215
    %v1217 = vpop.f32.mrb[0].mxu0
    %1218 = vmatprep.mubr.f32.mxu0 0.0
    %1219 = vmatmul.mubr.f32.gmra.mrb[0].mxu0 %v1099
    %v1220 = vpop.f32.mrb[0].mxu0
    %v1221 = vadd.f32 %v1085, %v1220
    %v1222 = vpop.f32.mrb[0].mxu0
    %1223 = vmatprep.mubr.f32.mxu0 0.0
    %1224 = vmatmul.mubr.f32.gmra.mrb[0].mxu0 %v1102
    %v1225 = vpop.f32.mrb[0].mxu0
    %v1226 = vadd.f32 %v1085, %v1225
    %v1227 = vpop.f32.mrb[0].mxu0
    %1228 = vmatprep.mubr.f32.mxu0 0.0
    %1229 = vmatmul.mubr.f32.gmra.mrb[0].mxu0 %v1105
    %v1230 = vpop.f32.mrb[0].mxu0
    %v1231 = vadd.f32 %v1085, %v1230
    %v1232 = vpop.f32.mrb[0].mxu0
    %1233 = vmatprep.mubr.f32.mxu0 0.0
    %1234 = vmatmul.mubr.f32.gmra.mrb[0].mxu0 %v1108
    %v1235 = vpop.f32.mrb[0].mxu0
    %v1236 = vadd.f32 %v1085, %v1235
    %v1237 = vpop.f32.mrb[0].mxu0
    %1238 = vmatprep.mubr.f32.mxu0 0.0
    %1239 = vmatmul.mubr.f32.gmra.mrb[0].mxu0 %v1111
    %v1240 = vpop.f32.mrb[0].mxu0
    %v1241 = vadd.f32 %v1085, %v1240
    %v1242 = vpop.f32.mrb[0].mxu0
    %1243 = vmatprep.mubr.f32.mxu0 0.0
    %1244 = vmatmul.mubr.f32.gmra.mrb[0].mxu0 %v1114
    %v1245 = vpop.f32.mrb[0].mxu0
    %v1246 = vadd.f32 %v1085, %v1245
    %v1247 = vpop.f32.mrb[0].mxu0
    %1248 = vmatprep.mubr.f32.mxu0 0.0
    %1249 = vmatmul.mubr.f32.gmra.mrb[0].mxu0 %v1117
    %v1250 = vpop.f32.mrb[0].mxu0
    %v1251 = vadd.f32 %v1085, %v1250
    %v1252 = vpop.f32.mrb[0].mxu0
    %1253 = vmatprep.mubr.f32.mxu0 0.0
    %1254 = vmatmul.mubr.f32.gmra.mrb[0].mxu0 %v1120
    %v1255 = vpop.f32.mrb[0].mxu0
    %v1256 = vadd.f32 %v1085, %v1255
    %v1257 = vpop.f32.mrb[0].mxu0
    %1258 = vmatprep.mubr.f32.mxu0 0.0
    %1259 = vmatmul.mubr.f32.gmra.mrb[0].mxu0 %v1123
    %v1260 = vpop.f32.mrb[0].mxu0
    %v1261 = vadd.f32 %v1085, %v1260
    %v1262 = vpop.f32.mrb[0].mxu0
    %1263 = vmatprep.mubr.f32.mxu0 0.0
    %1264 = vmatmul.mubr.f32.gmra.mrb[0].mxu0 %v1126
    %v1265 = vpop.f32.mrb[0].mxu0
    %v1266 = vadd.f32 %v1085, %v1265
    %v1267 = vpop.f32.mrb[0].mxu0
    %1268 = vmatprep.mubr.f32.mxu0 0.0
    %1269 = vmatmul.mubr.f32.gmra.mrb[0].mxu0 %v1129
    %v1270 = vpop.f32.mrb[0].mxu0
    %v1271 = vadd.f32 %v1085, %v1270
    %v1272 = vpop.f32.mrb[0].mxu0
    %1273 = vmatprep.mubr.f32.mxu0 0.0
    %1274 = vmatmul.mubr.f32.gmra.mrb[0].mxu0 %v1132
    %v1275 = vpop.f32.mrb[0].mxu0
    %v1276 = vadd.f32 %v1085, %v1275
    %v1277 = vpop.f32.mrb[0].mxu0
    %1278 = vdwg.mxu0
    %v1279 = vmul.f32 %v1201, %v1066
    %v1280 = vmul.f32 %v1206, %v1067
    %v1281 = vmul.f32 %v1211, %v1068
    %v1282 = vmul.f32 %v1216, %v1069
    %v1283 = vmul.f32 %v1221, %v1070
    %v1284 = vmul.f32 %v1226, %v1071
    %v1285 = vmul.f32 %v1231, %v1072
    %v1286 = vmul.f32 %v1236, %v1073
    %v1287 = vmul.f32 %v1241, %v1074
    %v1288 = vmul.f32 %v1246, %v1075
    %v1289 = vmul.f32 %v1251, %v1076
    %v1290 = vmul.f32 %v1256, %v1077
    %v1291 = vmul.f32 %v1261, %v1078
    %v1292 = vmul.f32 %v1266, %v1079
    %v1293 = vmul.f32 %v1271, %v1080
    %v1294 = vmul.f32 %v1276, %v1081
    %v1295 = vsel %vm873, %v1279, 0.0
    %1296 = vadd.xlane.f32.xlu0 %v1295
    %v1297 = vpop.xlane.xlu0 %1296
    %v1298 = vsel %vm873, %v1280, 0.0
    %1299 = vadd.xlane.f32.xlu0 %v1298
    %v1300 = vpop.xlane.xlu0 %1299
    %v1301 = vsel %vm873, %v1281, 0.0
    %1302 = vadd.xlane.f32.xlu0 %v1301
    %v1303 = vpop.xlane.xlu0 %1302
    %v1304 = vsel %vm873, %v1282, 0.0
    %1305 = vadd.xlane.f32.xlu0 %v1304
    %v1306 = vpop.xlane.xlu0 %1305
    %v1307 = vsel %vm873, %v1283, 0.0
    %1308 = vadd.xlane.f32.xlu0 %v1307
    %v1309 = vpop.xlane.xlu0 %1308
    %v1310 = vsel %vm873, %v1284, 0.0
    %1311 = vadd.xlane.f32.xlu0 %v1310
    %v1312 = vpop.xlane.xlu0 %1311
    %v1313 = vsel %vm873, %v1285, 0.0
    %1314 = vadd.xlane.f32.xlu0 %v1313
    %v1315 = vpop.xlane.xlu0 %1314
    %v1316 = vsel %vm873, %v1286, 0.0
    %1317 = vadd.xlane.f32.xlu0 %v1316
    %v1318 = vpop.xlane.xlu0 %1317
    %v1319 = vsel %vm873, %v1287, 0.0
    %1320 = vadd.xlane.f32.xlu0 %v1319
    %v1321 = vpop.xlane.xlu0 %1320
    %v1322 = vsel %vm873, %v1288, 0.0
    %1323 = vadd.xlane.f32.xlu0 %v1322
    %v1324 = vpop.xlane.xlu0 %1323
    %v1325 = vsel %vm873, %v1289, 0.0
    %1326 = vadd.xlane.f32.xlu0 %v1325
    %v1327 = vpop.xlane.xlu0 %1326
    %v1328 = vsel %vm873, %v1290, 0.0
    %1329 = vadd.xlane.f32.xlu0 %v1328
    %v1330 = vpop.xlane.xlu0 %1329
    %v1331 = vsel %vm873, %v1291, 0.0
    %1332 = vadd.xlane.f32.xlu0 %v1331
    %v1333 = vpop.xlane.xlu0 %1332
    %v1334 = vsel %vm873, %v1292, 0.0
    %1335 = vadd.xlane.f32.xlu0 %v1334
    %v1336 = vpop.xlane.xlu0 %1335
    %v1337 = vsel %vm873, %v1293, 0.0
    %1338 = vadd.xlane.f32.xlu0 %v1337
    %v1339 = vpop.xlane.xlu0 %1338
    %v1340 = vsel %vm873, %v1294, 0.0
    %1341 = vadd.xlane.f32.xlu0 %v1340
    %v1342 = vpop.xlane.xlu0 %1341
    %v1343 = vmul.f32 %v1201, %v1201
    %v1344 = vmul.f32 %v1206, %v1206
    %v1345 = vmul.f32 %v1211, %v1211
    %v1346 = vmul.f32 %v1216, %v1216
    %v1347 = vmul.f32 %v1221, %v1221
    %v1348 = vmul.f32 %v1226, %v1226
    %v1349 = vmul.f32 %v1231, %v1231
    %v1350 = vmul.f32 %v1236, %v1236
    %v1351 = vmul.f32 %v1241, %v1241
    %v1352 = vmul.f32 %v1246, %v1246
    %v1353 = vmul.f32 %v1251, %v1251
    %v1354 = vmul.f32 %v1256, %v1256
    %v1355 = vmul.f32 %v1261, %v1261
    %v1356 = vmul.f32 %v1266, %v1266
    %v1357 = vmul.f32 %v1271, %v1271
    %v1358 = vmul.f32 %v1276, %v1276
    %v1359 = vsel %vm873, %v1343, 0.0
    %1360 = vadd.xlane.f32.xlu0 %v1359
    %v1361 = vpop.xlane.xlu0 %1360
    %v1362 = vsel %vm873, %v1344, 0.0
    %1363 = vadd.xlane.f32.xlu0 %v1362
    %v1364 = vpop.xlane.xlu0 %1363
    %v1365 = vsel %vm873, %v1345, 0.0
    %1366 = vadd.xlane.f32.xlu0 %v1365
    %v1367 = vpop.xlane.xlu0 %1366
    %v1368 = vsel %vm873, %v1346, 0.0
    %1369 = vadd.xlane.f32.xlu0 %v1368
    %v1370 = vpop.xlane.xlu0 %1369
    %v1371 = vsel %vm873, %v1347, 0.0
    %1372 = vadd.xlane.f32.xlu0 %v1371
    %v1373 = vpop.xlane.xlu0 %1372
    %v1374 = vsel %vm873, %v1348, 0.0
    %1375 = vadd.xlane.f32.xlu0 %v1374
    %v1376 = vpop.xlane.xlu0 %1375
    %v1377 = vsel %vm873, %v1349, 0.0
    %1378 = vadd.xlane.f32.xlu0 %v1377
    %v1379 = vpop.xlane.xlu0 %1378
    %v1380 = vsel %vm873, %v1350, 0.0
    %1381 = vadd.xlane.f32.xlu0 %v1380
    %v1382 = vpop.xlane.xlu0 %1381
    %v1383 = vsel %vm873, %v1351, 0.0
    %1384 = vadd.xlane.f32.xlu0 %v1383
    %v1385 = vpop.xlane.xlu0 %1384
    %v1386 = vsel %vm873, %v1352, 0.0
    %1387 = vadd.xlane.f32.xlu0 %v1386
    %v1388 = vpop.xlane.xlu0 %1387
    %v1389 = vsel %vm873, %v1353, 0.0
    %1390 = vadd.xlane.f32.xlu0 %v1389
    %v1391 = vpop.xlane.xlu0 %1390
    %v1392 = vsel %vm873, %v1354, 0.0
    %1393 = vadd.xlane.f32.xlu0 %v1392
    %v1394 = vpop.xlane.xlu0 %1393
    %v1395 = vsel %vm873, %v1355, 0.0
    %1396 = vadd.xlane.f32.xlu0 %v1395
    %v1397 = vpop.xlane.xlu0 %1396
    %v1398 = vsel %vm873, %v1356, 0.0
    %1399 = vadd.xlane.f32.xlu0 %v1398
    %v1400 = vpop.xlane.xlu0 %1399
    %v1401 = vsel %vm873, %v1357, 0.0
    %1402 = vadd.xlane.f32.xlu0 %v1401
    %v1403 = vpop.xlane.xlu0 %1402
    %v1404 = vsel %vm873, %v1358, 0.0
    %1405 = vadd.xlane.f32.xlu0 %v1404
    %v1406 = vpop.xlane.xlu0 %1405
    %v1407 = vadd.f32 %v1361, 1e-12
    %v1408 = vadd.f32 %v1364, 1e-12
    %v1409 = vadd.f32 %v1367, 1e-12
    %v1410 = vadd.f32 %v1370, 1e-12
    %v1411 = vadd.f32 %v1373, 1e-12
    %v1412 = vadd.f32 %v1376, 1e-12
    %v1413 = vadd.f32 %v1379, 1e-12
    %v1414 = vadd.f32 %v1382, 1e-12
    %v1415 = vadd.f32 %v1385, 1e-12
    %v1416 = vadd.f32 %v1388, 1e-12
    %v1417 = vadd.f32 %v1391, 1e-12
    %v1418 = vadd.f32 %v1394, 1e-12
    %v1419 = vadd.f32 %v1397, 1e-12
    %v1420 = vadd.f32 %v1400, 1e-12
    %v1421 = vadd.f32 %v1403, 1e-12
    %v1422 = vadd.f32 %v1406, 1e-12
    %v1423 = vmul.f32 %v1201, 2.0
    %v1424 = vmul.f32 %v1206, 2.0
    %v1425 = vmul.f32 %v1211, 2.0
    %v1426 = vmul.f32 %v1216, 2.0
    %v1427 = vmul.f32 %v1221, 2.0
    %v1428 = vmul.f32 %v1226, 2.0
    %v1429 = vmul.f32 %v1231, 2.0
    %v1430 = vmul.f32 %v1236, 2.0
    %v1431 = vmul.f32 %v1241, 2.0
    %v1432 = vmul.f32 %v1246, 2.0
    %v1433 = vmul.f32 %v1251, 2.0
    %v1434 = vmul.f32 %v1256, 2.0
    %v1435 = vmul.f32 %v1261, 2.0
    %v1436 = vmul.f32 %v1266, 2.0
    %v1437 = vmul.f32 %v1271, 2.0
    %v1438 = vmul.f32 %v1276, 2.0
    %v1439 = vrcp.pop %v1407
    %v1440 = vmul.f32 %v1297, %v1439
    %v1441 = vrcp.pop %v1408
    %v1442 = vmul.f32 %v1300, %v1441
    %v1443 = vrcp.pop %v1409
    %v1444 = vmul.f32 %v1303, %v1443
    %v1445 = vrcp.pop %v1410
    %v1446 = vmul.f32 %v1306, %v1445
    %v1447 = vrcp.pop %v1411
    %v1448 = vmul.f32 %v1309, %v1447
    %v1449 = vrcp.pop %v1412
    %v1450 = vmul.f32 %v1312, %v1449
    %v1451 = vrcp.pop %v1413
    %v1452 = vmul.f32 %v1315, %v1451
    %v1453 = vrcp.pop %v1414
    %v1454 = vmul.f32 %v1318, %v1453
    %v1455 = vrcp.pop %v1415
    %v1456 = vmul.f32 %v1321, %v1455
    %v1457 = vrcp.pop %v1416
    %v1458 = vmul.f32 %v1324, %v1457
    %v1459 = vrcp.pop %v1417
    %v1460 = vmul.f32 %v1327, %v1459
    %v1461 = vrcp.pop %v1418
    %v1462 = vmul.f32 %v1330, %v1461
    %v1463 = vrcp.pop %v1419
    %v1464 = vmul.f32 %v1333, %v1463
    %v1465 = vrcp.pop %v1420
    %v1466 = vmul.f32 %v1336, %v1465
    %v1467 = vrcp.pop %v1421
    %v1468 = vmul.f32 %v1339, %v1467
    %v1469 = vrcp.pop %v1422
    %v1470 = vmul.f32 %v1342, %v1469
    %v1471 = vmul.f32 %v1423, %v1440
    %v1472 = vmul.f32 %v1424, %v1442
    %v1473 = vmul.f32 %v1425, %v1444
    %v1474 = vmul.f32 %v1426, %v1446
    %v1475 = vmul.f32 %v1427, %v1448
    %v1476 = vmul.f32 %v1428, %v1450
    %v1477 = vmul.f32 %v1429, %v1452
    %v1478 = vmul.f32 %v1430, %v1454
    %v1479 = vmul.f32 %v1431, %v1456
    %v1480 = vmul.f32 %v1432, %v1458
    %v1481 = vmul.f32 %v1433, %v1460
    %v1482 = vmul.f32 %v1434, %v1462
    %v1483 = vmul.f32 %v1435, %v1464
    %v1484 = vmul.f32 %v1436, %v1466
    %v1485 = vmul.f32 %v1437, %v1468
    %v1486 = vmul.f32 %v1438, %v1470
    %v1487 = vsub.f32 %v1066, %v1471
    %v1488 = vsub.f32 %v1067, %v1472
    %v1489 = vsub.f32 %v1068, %v1473
    %v1490 = vsub.f32 %v1069, %v1474
    %v1491 = vsub.f32 %v1070, %v1475
    %v1492 = vsub.f32 %v1071, %v1476
    %v1493 = vsub.f32 %v1072, %v1477
    %v1494 = vsub.f32 %v1073, %v1478
    %v1495 = vsub.f32 %v1074, %v1479
    %v1496 = vsub.f32 %v1075, %v1480
    %v1497 = vsub.f32 %v1076, %v1481
    %v1498 = vsub.f32 %v1077, %v1482
    %v1499 = vsub.f32 %v1078, %v1483
    %v1500 = vsub.f32 %v1079, %v1484
    %v1501 = vsub.f32 %v1080, %v1485
    %v1502 = vsub.f32 %v1081, %v1486
    %v1503 = vlaneseq
    %v1504 = vshrl.u32 %v1503, 7
    %v1505 = vsub.s32 0, %v1504
    %v1506 = vrot.slane %v141, %v1505
    %v1508 = vsel %vm873, %v1487, 0
    %v1511 = vsel %vm873, %v1488, 0
    %v1514 = vsel %vm873, %v1489, 0
    %v1517 = vsel %vm873, %v1490, 0
    %v1520 = vsel %vm873, %v1491, 0
    %v1523 = vsel %vm873, %v1492, 0
    %v1526 = vsel %vm873, %v1493, 0
    %v1529 = vsel %vm873, %v1494, 0
    %v1532 = vsel %vm873, %v1495, 0
    %v1535 = vsel %vm873, %v1496, 0
    %v1538 = vsel %vm873, %v1497, 0
    %v1541 = vsel %vm873, %v1498, 0
    %v1544 = vsel %vm873, %v1499, 0
    %v1547 = vsel %vm873, %v1500, 0
    %v1550 = vsel %vm873, %v1501, 0
    %v1553 = vsel %vm873, %v1502, 0
    %1555 = vmatprep.subr.mxu0 0.0
    %1556 = vmatpush1.msra.mxu0 %v138
    %1557 = vmatprep.subr.mxu0 0.0
    %1558 = vmatpush1.msra.mxu0 0.0
    %1559 = vmatprep.subr.mxu0 0.0
    %1560 = vmatpush1.msra.mxu0 0.0
    %1561 = vmatprep.subr.mxu0 0.0
    %1562 = vmatpush1.msra.mxu0 0.0
    %1563 = vmatprep.subr.mxu0 0.0
    %1564 = vmatpush1.msra.mxu0 0.0
    %1565 = vmatprep.subr.mxu0 0.0
    %1566 = vmatpush1.msra.mxu0 0.0
    %1567 = vmatprep.subr.mxu0 0.0
    %1568 = vmatpush1.msra.mxu0 0.0
    %1569 = vmatprep.subr.mxu0 0.0
    %1570 = vmatpush1.msra.mxu0 0.0
    %1571 = vmatprep.subr.mxu0 0.0
    %1572 = vmatpush1.msra.mxu0 0.0
    %1573 = vmatprep.subr.mxu0 0.0
    %1574 = vmatpush1.msra.mxu0 0.0
    %1575 = vmatprep.subr.mxu0 0.0
    %1576 = vmatpush1.msra.mxu0 0.0
    %1577 = vmatprep.subr.mxu0 0.0
    %1578 = vmatpush1.msra.mxu0 0.0
    %1579 = vmatprep.subr.mxu0 0.0
    %1580 = vmatpush1.msra.mxu0 0.0
    %1581 = vmatprep.subr.mxu0 0.0
    %1582 = vmatpush1.msra.mxu0 0.0
    %1583 = vmatprep.subr.mxu0 0.0
    %1584 = vmatpush1.msra.mxu0 0.0
    %1585 = vmatprep.subr.mxu0 0.0
    %1586 = vmatpush1.msra.mxu0 0.0
    %1587 = vmatprep.subr.mxu0 0.0
    %1588 = vmatpush1.msra.mxu0 0.0
    %1589 = vmatprep.subr.mxu0 0.0
    %1590 = vmatpush1.msra.mxu0 0.0
    %1591 = vmatprep.subr.mxu0 0.0
    %1592 = vmatpush1.msra.mxu0 0.0
    %1593 = vmatprep.subr.mxu0 0.0
    %1594 = vmatpush1.msra.mxu0 0.0
    %1595 = vmatprep.subr.mxu0 0.0
    %1596 = vmatpush1.msra.mxu0 0.0
    %1597 = vmatprep.subr.mxu0 0.0
    %1598 = vmatpush1.msra.mxu0 0.0
    %1599 = vmatprep.subr.mxu0 0.0
    %1600 = vmatpush1.msra.mxu0 0.0
    %1601 = vmatprep.subr.mxu0 0.0
    %1602 = vmatpush1.msra.mxu0 0.0
    %1603 = vmatprep.subr.mxu0 0.0
    %1604 = vmatpush1.msra.mxu0 0.0
    %1605 = vmatprep.subr.mxu0 0.0
    %1606 = vmatpush1.msra.mxu0 0.0
    %1607 = vmatprep.subr.mxu0 0.0
    %1608 = vmatpush1.msra.mxu0 0.0
    %1609 = vmatprep.subr.mxu0 0.0
    %1610 = vmatpush1.msra.mxu0 0.0
    %1611 = vmatprep.subr.mxu0 0.0
    %1612 = vmatpush1.msra.mxu0 0.0
    %1613 = vmatprep.subr.mxu0 0.0
    %1614 = vmatpush1.msra.mxu0 0.0
    %1615 = vmatprep.subr.mxu0 0.0
    %1616 = vmatpush1.msra.mxu0 0.0
    %1617 = vmatprep.subr.mxu0 0.0
    %1618 = vmatpush1.msra.mxu0 0.0
    %1619 = vmatprep.mubr.f32.mxu0 0.0
    %1620 = vmatmul.mubr.f32.gmra.mrb[0].mxu0 %v1508
    %v1621 = vpop.f32.mrb[0].mxu0
    %v1622 = vadd.f32 %v1506, %v1621
    %v1623 = vpop.f32.mrb[0].mxu0
    %1624 = vmatprep.mubr.f32.mxu0 0.0
    %1625 = vmatmul.mubr.f32.gmra.mrb[0].mxu0 %v1511
    %v1626 = vpop.f32.mrb[0].mxu0
    %v1627 = vadd.f32 %v1506, %v1626
    %v1628 = vpop.f32.mrb[0].mxu0
    %1629 = vmatprep.mubr.f32.mxu0 0.0
    %1630 = vmatmul.mubr.f32.gmra.mrb[0].mxu0 %v1514
    %v1631 = vpop.f32.mrb[0].mxu0
    %v1632 = vadd.f32 %v1506, %v1631
    %v1633 = vpop.f32.mrb[0].mxu0
    %1634 = vmatprep.mubr.f32.mxu0 0.0
    %1635 = vmatmul.mubr.f32.gmra.mrb[0].mxu0 %v1517
    %v1636 = vpop.f32.mrb[0].mxu0
    %v1637 = vadd.f32 %v1506, %v1636
    %v1638 = vpop.f32.mrb[0].mxu0
    %1639 = vmatprep.mubr.f32.mxu0 0.0
    %1640 = vmatmul.mubr.f32.gmra.mrb[0].mxu0 %v1520
    %v1641 = vpop.f32.mrb[0].mxu0
    %v1642 = vadd.f32 %v1506, %v1641
    %v1643 = vpop.f32.mrb[0].mxu0
    %1644 = vmatprep.mubr.f32.mxu0 0.0
    %1645 = vmatmul.mubr.f32.gmra.mrb[0].mxu0 %v1523
    %v1646 = vpop.f32.mrb[0].mxu0
    %v1647 = vadd.f32 %v1506, %v1646
    %v1648 = vpop.f32.mrb[0].mxu0
    %1649 = vmatprep.mubr.f32.mxu0 0.0
    %1650 = vmatmul.mubr.f32.gmra.mrb[0].mxu0 %v1526
    %v1651 = vpop.f32.mrb[0].mxu0
    %v1652 = vadd.f32 %v1506, %v1651
    %v1653 = vpop.f32.mrb[0].mxu0
    %1654 = vmatprep.mubr.f32.mxu0 0.0
    %1655 = vmatmul.mubr.f32.gmra.mrb[0].mxu0 %v1529
    %v1656 = vpop.f32.mrb[0].mxu0
    %v1657 = vadd.f32 %v1506, %v1656
    %v1658 = vpop.f32.mrb[0].mxu0
    %1659 = vmatprep.mubr.f32.mxu0 0.0
    %1660 = vmatmul.mubr.f32.gmra.mrb[0].mxu0 %v1532
    %v1661 = vpop.f32.mrb[0].mxu0
    %v1662 = vadd.f32 %v1506, %v1661
    %v1663 = vpop.f32.mrb[0].mxu0
    %1664 = vmatprep.mubr.f32.mxu0 0.0
    %1665 = vmatmul.mubr.f32.gmra.mrb[0].mxu0 %v1535
    %v1666 = vpop.f32.mrb[0].mxu0
    %v1667 = vadd.f32 %v1506, %v1666
    %v1668 = vpop.f32.mrb[0].mxu0
    %1669 = vmatprep.mubr.f32.mxu0 0.0
    %1670 = vmatmul.mubr.f32.gmra.mrb[0].mxu0 %v1538
    %v1671 = vpop.f32.mrb[0].mxu0
    %v1672 = vadd.f32 %v1506, %v1671
    %v1673 = vpop.f32.mrb[0].mxu0
    %1674 = vmatprep.mubr.f32.mxu0 0.0
    %1675 = vmatmul.mubr.f32.gmra.mrb[0].mxu0 %v1541
    %v1676 = vpop.f32.mrb[0].mxu0
    %v1677 = vadd.f32 %v1506, %v1676
    %v1678 = vpop.f32.mrb[0].mxu0
    %1679 = vmatprep.mubr.f32.mxu0 0.0
    %1680 = vmatmul.mubr.f32.gmra.mrb[0].mxu0 %v1544
    %v1681 = vpop.f32.mrb[0].mxu0
    %v1682 = vadd.f32 %v1506, %v1681
    %v1683 = vpop.f32.mrb[0].mxu0
    %1684 = vmatprep.mubr.f32.mxu0 0.0
    %1685 = vmatmul.mubr.f32.gmra.mrb[0].mxu0 %v1547
    %v1686 = vpop.f32.mrb[0].mxu0
    %v1687 = vadd.f32 %v1506, %v1686
    %v1688 = vpop.f32.mrb[0].mxu0
    %1689 = vmatprep.mubr.f32.mxu0 0.0
    %1690 = vmatmul.mubr.f32.gmra.mrb[0].mxu0 %v1550
    %v1691 = vpop.f32.mrb[0].mxu0
    %v1692 = vadd.f32 %v1506, %v1691
    %v1693 = vpop.f32.mrb[0].mxu0
    %1694 = vmatprep.mubr.f32.mxu0 0.0
    %1695 = vmatmul.mubr.f32.gmra.mrb[0].mxu0 %v1553
    %v1696 = vpop.f32.mrb[0].mxu0
    %v1697 = vadd.f32 %v1506, %v1696
    %v1698 = vpop.f32.mrb[0].mxu0
    %1699 = vdwg.mxu0
    %v1700 = vtanh.pop %v1622
    %v1701 = vtanh.pop %v1627
    %v1702 = vtanh.pop %v1632
    %v1703 = vtanh.pop %v1637
    %v1704 = vtanh.pop %v1642
    %v1705 = vtanh.pop %v1647
    %v1706 = vtanh.pop %v1652
    %v1707 = vtanh.pop %v1657
    %v1708 = vtanh.pop %v1662
    %v1709 = vtanh.pop %v1667
    %v1710 = vtanh.pop %v1672
    %v1711 = vtanh.pop %v1677
    %v1712 = vtanh.pop %v1682
    %v1713 = vtanh.pop %v1687
    %v1714 = vtanh.pop %v1692
    %v1715 = vtanh.pop %v1697
    %v1716 = vpack.c.bf16 %v1701, %v1700
    %v1717 = vpack.c.bf16 %v1703, %v1702
    %v1718 = vpack.c.bf16 %v1705, %v1704
    %v1719 = vpack.c.bf16 %v1707, %v1706
    %v1720 = vpack.c.bf16 %v1709, %v1708
    %v1721 = vpack.c.bf16 %v1711, %v1710
    %v1722 = vpack.c.bf16 %v1713, %v1712
    %v1723 = vpack.c.bf16 %v1715, %v1714
    %v1724 = vld [vmem:[#allocation8] sm:$0xff]
    %v1725 = vld [vmem:[#allocation8 + $0x8] sm:$0xff]
    %v1726 = vld [vmem:[#allocation8 + $0x10] sm:$0xff]
    %v1727 = vld [vmem:[#allocation8 + $0x18] sm:$0xff]
    %v1728 = vld [vmem:[#allocation8 + $0x20] sm:$0xff]
    %v1729 = vld [vmem:[#allocation8 + $0x28] sm:$0xff]
    %v1730 = vld [vmem:[#allocation8 + $0x30] sm:$0xff]
    %v1731 = vld [vmem:[#allocation8 + $0x38] sm:$0xff]
    %v1732 = vld [vmem:[#allocation8 + $0x40] sm:$0xff]
    %v1733 = vld [vmem:[#allocation8 + $0x48] sm:$0xff]
    %v1734 = vld [vmem:[#allocation8 + $0x50] sm:$0xff]
    %v1735 = vld [vmem:[#allocation8 + $0x58] sm:$0xff]
    %v1736 = vld [vmem:[#allocation8 + $0x60] sm:$0xff]
    %v1737 = vld [vmem:[#allocation8 + $0x68] sm:$0xff]
    %v1738 = vld [vmem:[#allocation8 + $0x70] sm:$0xff]
    %v1739 = vld [vmem:[#allocation8 + $0x78] sm:$0xff]
    %v1740 = vld [vmem:[#allocation8 + $0x80] sm:$0xff]
    %v1741 = vld [vmem:[#allocation8 + $0x88] sm:$0xff]
    %v1742 = vld [vmem:[#allocation8 + $0x90] sm:$0xff]
    %v1743 = vld [vmem:[#allocation8 + $0x98] sm:$0xff]
    %v1744 = vld [vmem:[#allocation8 + $0xa0] sm:$0xff]
    %v1745 = vld [vmem:[#allocation8 + $0xa8] sm:$0xff]
    %v1746 = vld [vmem:[#allocation8 + $0xb0] sm:$0xff]
    %v1747 = vld [vmem:[#allocation8 + $0xb8] sm:$0xff]
    %v1748 = vld [vmem:[#allocation8 + $0xc0] sm:$0xff]
    %v1749 = vld [vmem:[#allocation8 + $0xc8] sm:$0xff]
    %v1750 = vld [vmem:[#allocation8 + $0xd0] sm:$0xff]
    %v1751 = vld [vmem:[#allocation8 + $0xd8] sm:$0xff]
    %v1752 = vld [vmem:[#allocation8 + $0xe0] sm:$0xff]
    %v1753 = vld [vmem:[#allocation8 + $0xe8] sm:$0xff]
    %v1754 = vld [vmem:[#allocation8 + $0xf0] sm:$0xff]
    %v1755 = vld [vmem:[#allocation8 + $0xf8] sm:$0xff]
    %v1756 = vlaneseq
    %v1757 = vshrl.u32 %v1756, 7
    %v1758 = vsub.s32 0, %v1757
    %v1759 = vrot.slane %v146, %v1758
    %v1760 = vlaneseq
    %v1761 = vshrl.u32 %v1760, 7
    %v1762 = vsub.s32 0, %v1761
    %v1763 = vrot.slane %v147, %v1762
    %v1764 = vlaneseq
    %v1765 = vshrl.u32 %v1764, 7
    %v1766 = vsub.s32 0, %v1765
    %v1767 = vrot.slane %v148, %v1766
    %v1768 = vlaneseq
    %v1769 = vshrl.u32 %v1768, 7
    %v1770 = vsub.s32 0, %v1769
    %v1771 = vrot.slane %v149, %v1770
    %v1804 = vunpack.c.l.b16 %v1724
    %v1805 = vunpack.c.h.b16 %v1724
    %v1806 = vunpack.c.l.b16 %v1725
    %v1807 = vunpack.c.h.b16 %v1725
    %v1808 = vunpack.c.l.b16 %v1726
    %v1809 = vunpack.c.h.b16 %v1726
    %v1810 = vunpack.c.l.b16 %v1727
    %v1811 = vunpack.c.h.b16 %v1727
    %v1812 = vunpack.c.l.b16 %v1728
    %v1813 = vunpack.c.h.b16 %v1728
    %v1814 = vunpack.c.l.b16 %v1729
    %v1815 = vunpack.c.h.b16 %v1729
    %v1816 = vunpack.c.l.b16 %v1730
    %v1817 = vunpack.c.h.b16 %v1730
    %v1818 = vunpack.c.l.b16 %v1731
    %v1819 = vunpack.c.h.b16 %v1731
    %v1820 = vunpack.c.l.b16 %v1732
    %v1821 = vunpack.c.h.b16 %v1732
    %v1822 = vunpack.c.l.b16 %v1733
    %v1823 = vunpack.c.h.b16 %v1733
    %v1824 = vunpack.c.l.b16 %v1734
    %v1825 = vunpack.c.h.b16 %v1734
    %v1826 = vunpack.c.l.b16 %v1735
    %v1827 = vunpack.c.h.b16 %v1735
    %v1828 = vunpack.c.l.b16 %v1736
    %v1829 = vunpack.c.h.b16 %v1736
    %v1830 = vunpack.c.l.b16 %v1737
    %v1831 = vunpack.c.h.b16 %v1737
    %v1832 = vunpack.c.l.b16 %v1738
    %v1833 = vunpack.c.h.b16 %v1738
    %v1834 = vunpack.c.l.b16 %v1739
    %v1835 = vunpack.c.h.b16 %v1739
    %v1836 = vunpack.c.l.b16 %v1740
    %v1837 = vunpack.c.h.b16 %v1740
    %v1838 = vunpack.c.l.b16 %v1741
    %v1839 = vunpack.c.h.b16 %v1741
    %v1840 = vunpack.c.l.b16 %v1742
    %v1841 = vunpack.c.h.b16 %v1742
    %v1842 = vunpack.c.l.b16 %v1743
    %v1843 = vunpack.c.h.b16 %v1743
    %v1844 = vunpack.c.l.b16 %v1744
    %v1845 = vunpack.c.h.b16 %v1744
    %v1846 = vunpack.c.l.b16 %v1745
    %v1847 = vunpack.c.h.b16 %v1745
    %v1848 = vunpack.c.l.b16 %v1746
    %v1849 = vunpack.c.h.b16 %v1746
    %v1850 = vunpack.c.l.b16 %v1747
    %v1851 = vunpack.c.h.b16 %v1747
    %v1852 = vunpack.c.l.b16 %v1748
    %v1853 = vunpack.c.h.b16 %v1748
    %v1854 = vunpack.c.l.b16 %v1749
    %v1855 = vunpack.c.h.b16 %v1749
    %v1856 = vunpack.c.l.b16 %v1750
    %v1857 = vunpack.c.h.b16 %v1750
    %v1858 = vunpack.c.l.b16 %v1751
    %v1859 = vunpack.c.h.b16 %v1751
    %v1860 = vunpack.c.l.b16 %v1752
    %v1861 = vunpack.c.h.b16 %v1752
    %v1862 = vunpack.c.l.b16 %v1753
    %v1863 = vunpack.c.h.b16 %v1753
    %v1864 = vunpack.c.l.b16 %v1754
    %v1865 = vunpack.c.h.b16 %v1754
    %v1866 = vunpack.c.l.b16 %v1755
    %v1867 = vunpack.c.h.b16 %v1755
    %v1868 = vpack.c.b16 %v1808, %v1804
    %v1869 = vpack.c.b16 %v1809, %v1805
    %v1870 = vpack.c.b16 %v1810, %v1806
    %v1871 = vpack.c.b16 %v1811, %v1807
    %v1872 = vpack.c.b16 %v1816, %v1812
    %v1873 = vpack.c.b16 %v1817, %v1813
    %v1874 = vpack.c.b16 %v1818, %v1814
    %v1875 = vpack.c.b16 %v1819, %v1815
    %v1876 = vpack.c.b16 %v1824, %v1820
    %v1877 = vpack.c.b16 %v1825, %v1821
    %v1878 = vpack.c.b16 %v1826, %v1822
    %v1879 = vpack.c.b16 %v1827, %v1823
    %v1880 = vpack.c.b16 %v1832, %v1828
    %v1881 = vpack.c.b16 %v1833, %v1829
    %v1882 = vpack.c.b16 %v1834, %v1830
    %v1883 = vpack.c.b16 %v1835, %v1831
    %v1884 = vpack.c.b16 %v1840, %v1836
    %v1885 = vpack.c.b16 %v1841, %v1837
    %v1886 = vpack.c.b16 %v1842, %v1838
    %v1887 = vpack.c.b16 %v1843, %v1839
    %v1888 = vpack.c.b16 %v1848, %v1844
    %v1889 = vpack.c.b16 %v1849, %v1845
    %v1890 = vpack.c.b16 %v1850, %v1846
    %v1891 = vpack.c.b16 %v1851, %v1847
    %v1892 = vpack.c.b16 %v1856, %v1852
    %v1893 = vpack.c.b16 %v1857, %v1853
    %v1894 = vpack.c.b16 %v1858, %v1854
    %v1895 = vpack.c.b16 %v1859, %v1855
    %v1896 = vpack.c.b16 %v1864, %v1860
    %v1897 = vpack.c.b16 %v1865, %v1861
    %v1898 = vpack.c.b16 %v1866, %v1862
    %v1899 = vpack.c.b16 %v1867, %v1863
    %1932 = vmatprep.subr.bf16.mxu0 %v1869
    %1933 = vmatpush1.bf16.msra.mxu0 %v1868
    %1934 = vmatprep.subr.bf16.mxu0 %v1873
    %1935 = vmatpush1.bf16.msra.mxu0 %v1872
    %1936 = vmatprep.subr.bf16.mxu0 %v1877
    %1937 = vmatpush1.bf16.msra.mxu0 %v1876
    %1938 = vmatprep.subr.bf16.mxu0 %v1881
    %1939 = vmatpush1.bf16.msra.mxu0 %v1880
    %1940 = vmatprep.subr.bf16.mxu0 %v1885
    %1941 = vmatpush1.bf16.msra.mxu0 %v1884
    %1942 = vmatprep.subr.bf16.mxu0 %v1889
    %1943 = vmatpush1.bf16.msra.mxu0 %v1888
    %1944 = vmatprep.subr.bf16.mxu0 %v1893
    %1945 = vmatpush1.bf16.msra.mxu0 %v1892
    %1946 = vmatprep.subr.bf16.mxu0 %v1897
    %1947 = vmatpush1.bf16.msra.mxu0 %v1896
    %1948 = vmatprep.subr.bf16.mxu0 0
    %1949 = vmatpush1.bf16.msra.mxu0 0
    %1950 = vmatprep.subr.bf16.mxu0 0
    %1951 = vmatpush1.bf16.msra.mxu0 0
    %1952 = vmatprep.subr.bf16.mxu0 0
    %1953 = vmatpush1.bf16.msra.mxu0 0
    %1954 = vmatprep.subr.bf16.mxu0 0
    %1955 = vmatpush1.bf16.msra.mxu0 0
    %1956 = vmatprep.subr.bf16.mxu0 0
    %1957 = vmatpush1.bf16.msra.mxu0 0
    %1958 = vmatprep.subr.bf16.mxu0 0
    %1959 = vmatpush1.bf16.msra.mxu0 0
    %1960 = vmatprep.subr.bf16.mxu0 0
    %1961 = vmatpush1.bf16.msra.mxu0 0
    %1962 = vmatprep.subr.bf16.mxu0 0
    %1963 = vmatpush1.bf16.msra.mxu0 0
    %1964 = vmatprep.mubr.bf16.mxu0 0
    %1965 = vmatmul.mubr.bf16.gmra.mrb[0].mxu0 %v1716
    %v1966 = vpop.f32.mrb[0].mxu0
    %v1967 = vadd.f32 %v1759, %v1966
    %v1968 = vpop.f32.mrb[0].mxu0
    %v1969 = vadd.f32 %v1763, %v1968
    %v1970 = vpop.f32.mrb[0].mxu0
    %v1971 = vadd.f32 %v1759, %v1970
    %v1972 = vpop.f32.mrb[0].mxu0
    %v1973 = vadd.f32 %v1763, %v1972
    %1974 = vmatprep.mubr.bf16.mxu0 0
    %1975 = vmatmul.mubr.bf16.gmra.mrb[0].mxu0 %v1717
    %v1976 = vpop.f32.mrb[0].mxu0
    %v1977 = vadd.f32 %v1759, %v1976
    %v1978 = vpop.f32.mrb[0].mxu0
    %v1979 = vadd.f32 %v1763, %v1978
    %v1980 = vpop.f32.mrb[0].mxu0
    %v1981 = vadd.f32 %v1759, %v1980
    %v1982 = vpop.f32.mrb[0].mxu0
    %v1983 = vadd.f32 %v1763, %v1982
    %1984 = vmatprep.mubr.bf16.mxu0 0
    %1985 = vmatmul.mubr.bf16.gmra.mrb[0].mxu0 %v1718
    %v1986 = vpop.f32.mrb[0].mxu0
    %v1987 = vadd.f32 %v1759, %v1986
    %v1988 = vpop.f32.mrb[0].mxu0
    %v1989 = vadd.f32 %v1763, %v1988
    %v1990 = vpop.f32.mrb[0].mxu0
    %v1991 = vadd.f32 %v1759, %v1990
    %v1992 = vpop.f32.mrb[0].mxu0
    %v1993 = vadd.f32 %v1763, %v1992
    %1994 = vmatprep.mubr.bf16.mxu0 0
    %1995 = vmatmul.mubr.bf16.gmra.mrb[0].mxu0 %v1719
    %v1996 = vpop.f32.mrb[0].mxu0
    %v1997 = vadd.f32 %v1759, %v1996
    %v1998 = vpop.f32.mrb[0].mxu0
    %v1999 = vadd.f32 %v1763, %v1998
    %v2000 = vpop.f32.mrb[0].mxu0
    %v2001 = vadd.f32 %v1759, %v2000
    %v2002 = vpop.f32.mrb[0].mxu0
    %v2003 = vadd.f32 %v1763, %v2002
    %2004 = vmatprep.mubr.bf16.mxu0 0
    %2005 = vmatmul.mubr.bf16.gmra.mrb[0].mxu0 %v1720
    %v2006 = vpop.f32.mrb[0].mxu0
    %v2007 = vadd.f32 %v1759, %v2006
    %v2008 = vpop.f32.mrb[0].mxu0
    %v2009 = vadd.f32 %v1763, %v2008
    %v2010 = vpop.f32.mrb[0].mxu0
    %v2011 = vadd.f32 %v1759, %v2010
    %v2012 = vpop.f32.mrb[0].mxu0
    %v2013 = vadd.f32 %v1763, %v2012
    %2014 = vmatprep.mubr.bf16.mxu0 0
    %2015 = vmatmul.mubr.bf16.gmra.mrb[0].mxu0 %v1721
    %v2016 = vpop.f32.mrb[0].mxu0
    %v2017 = vadd.f32 %v1759, %v2016
    %v2018 = vpop.f32.mrb[0].mxu0
    %v2019 = vadd.f32 %v1763, %v2018
    %v2020 = vpop.f32.mrb[0].mxu0
    %v2021 = vadd.f32 %v1759, %v2020
    %v2022 = vpop.f32.mrb[0].mxu0
    %v2023 = vadd.f32 %v1763, %v2022
    %2024 = vmatprep.mubr.bf16.mxu0 0
    %2025 = vmatmul.mubr.bf16.gmra.mrb[0].mxu0 %v1722
    %v2026 = vpop.f32.mrb[0].mxu0
    %v2027 = vadd.f32 %v1759, %v2026
    %v2028 = vpop.f32.mrb[0].mxu0
    %v2029 = vadd.f32 %v1763, %v2028
    %v2030 = vpop.f32.mrb[0].mxu0
    %v2031 = vadd.f32 %v1759, %v2030
    %v2032 = vpop.f32.mrb[0].mxu0
    %v2033 = vadd.f32 %v1763, %v2032
    %2034 = vmatprep.mubr.bf16.mxu0 0
    %2035 = vmatmul.mubr.bf16.gmra.mrb[0].mxu0 %v1723
    %v2036 = vpop.f32.mrb[0].mxu0
    %v2037 = vadd.f32 %v1759, %v2036
    %v2038 = vpop.f32.mrb[0].mxu0
    %v2039 = vadd.f32 %v1763, %v2038
    %v2040 = vpop.f32.mrb[0].mxu0
    %v2041 = vadd.f32 %v1759, %v2040
    %v2042 = vpop.f32.mrb[0].mxu0
    %v2043 = vadd.f32 %v1763, %v2042
    %2044 = vdwg.mxu0
    %2045 = vmatprep.subr.bf16.mxu0 %v1871
    %2046 = vmatpush1.bf16.msra.mxu0 %v1870
    %2047 = vmatprep.subr.bf16.mxu0 %v1875
    %2048 = vmatpush1.bf16.msra.mxu0 %v1874
    %2049 = vmatprep.subr.bf16.mxu0 %v1879
    %2050 = vmatpush1.bf16.msra.mxu0 %v1878
    %2051 = vmatprep.subr.bf16.mxu0 %v1883
    %2052 = vmatpush1.bf16.msra.mxu0 %v1882
    %2053 = vmatprep.subr.bf16.mxu0 %v1887
    %2054 = vmatpush1.bf16.msra.mxu0 %v1886
    %2055 = vmatprep.subr.bf16.mxu0 %v1891
    %2056 = vmatpush1.bf16.msra.mxu0 %v1890
    %2057 = vmatprep.subr.bf16.mxu0 %v1895
    %2058 = vmatpush1.bf16.msra.mxu0 %v1894
    %2059 = vmatprep.subr.bf16.mxu0 %v1899
    %2060 = vmatpush1.bf16.msra.mxu0 %v1898
    %2061 = vmatprep.subr.bf16.mxu0 0
    %2062 = vmatpush1.bf16.msra.mxu0 0
    %2063 = vmatprep.subr.bf16.mxu0 0
    %2064 = vmatpush1.bf16.msra.mxu0 0
    %2065 = vmatprep.subr.bf16.mxu0 0
    %2066 = vmatpush1.bf16.msra.mxu0 0
    %2067 = vmatprep.subr.bf16.mxu0 0
    %2068 = vmatpush1.bf16.msra.mxu0 0
    %2069 = vmatprep.subr.bf16.mxu0 0
    %2070 = vmatpush1.bf16.msra.mxu0 0
    %2071 = vmatprep.subr.bf16.mxu0 0
    %2072 = vmatpush1.bf16.msra.mxu0 0
    %2073 = vmatprep.subr.bf16.mxu0 0
    %2074 = vmatpush1.bf16.msra.mxu0 0
    %2075 = vmatprep.subr.bf16.mxu0 0
    %2076 = vmatpush1.bf16.msra.mxu0 0
    %2077 = vmatprep.mubr.bf16.mxu0 0
    %2078 = vmatmul.mubr.bf16.gmra.mrb[0].mxu0 %v1716
    %v2079 = vpop.f32.mrb[0].mxu0
    %v2080 = vadd.f32 %v1767, %v2079
    %v2081 = vpop.f32.mrb[0].mxu0
    %v2082 = vadd.f32 %v1771, %v2081
    %v2083 = vpop.f32.mrb[0].mxu0
    %v2084 = vadd.f32 %v1767, %v2083
    %v2085 = vpop.f32.mrb[0].mxu0
    %v2086 = vadd.f32 %v1771, %v2085
    %2087 = vmatprep.mubr.bf16.mxu0 0
    %2088 = vmatmul.mubr.bf16.gmra.mrb[0].mxu0 %v1717
    %v2089 = vpop.f32.mrb[0].mxu0
    %v2090 = vadd.f32 %v1767, %v2089
    %v2091 = vpop.f32.mrb[0].mxu0
    %v2092 = vadd.f32 %v1771, %v2091
    %v2093 = vpop.f32.mrb[0].mxu0
    %v2094 = vadd.f32 %v1767, %v2093
    %v2095 = vpop.f32.mrb[0].mxu0
    %v2096 = vadd.f32 %v1771, %v2095
    %2097 = vmatprep.mubr.bf16.mxu0 0
    %2098 = vmatmul.mubr.bf16.gmra.mrb[0].mxu0 %v1718
    %v2099 = vpop.f32.mrb[0].mxu0
    %v2100 = vadd.f32 %v1767, %v2099
    %v2101 = vpop.f32.mrb[0].mxu0
    %v2102 = vadd.f32 %v1771, %v2101
    %v2103 = vpop.f32.mrb[0].mxu0
    %v2104 = vadd.f32 %v1767, %v2103
    %v2105 = vpop.f32.mrb[0].mxu0
    %v2106 = vadd.f32 %v1771, %v2105
    %2107 = vmatprep.mubr.bf16.mxu0 0
    %2108 = vmatmul.mubr.bf16.gmra.mrb[0].mxu0 %v1719
    %v2109 = vpop.f32.mrb[0].mxu0
    %v2110 = vadd.f32 %v1767, %v2109
    %v2111 = vpop.f32.mrb[0].mxu0
    %v2112 = vadd.f32 %v1771, %v2111
    %v2113 = vpop.f32.mrb[0].mxu0
    %v2114 = vadd.f32 %v1767, %v2113
    %v2115 = vpop.f32.mrb[0].mxu0
    %v2116 = vadd.f32 %v1771, %v2115
    %2117 = vmatprep.mubr.bf16.mxu0 0
    %2118 = vmatmul.mubr.bf16.gmra.mrb[0].mxu0 %v1720
    %v2119 = vpop.f32.mrb[0].mxu0
    %v2120 = vadd.f32 %v1767, %v2119
    %v2121 = vpop.f32.mrb[0].mxu0
    %v2122 = vadd.f32 %v1771, %v2121
    %v2123 = vpop.f32.mrb[0].mxu0
    %v2124 = vadd.f32 %v1767, %v2123
    %v2125 = vpop.f32.mrb[0].mxu0
    %v2126 = vadd.f32 %v1771, %v2125
    %2127 = vmatprep.mubr.bf16.mxu0 0
    %2128 = vmatmul.mubr.bf16.gmra.mrb[0].mxu0 %v1721
    %v2129 = vpop.f32.mrb[0].mxu0
    %v2130 = vadd.f32 %v1767, %v2129
    %v2131 = vpop.f32.mrb[0].mxu0
    %v2132 = vadd.f32 %v1771, %v2131
    %v2133 = vpop.f32.mrb[0].mxu0
    %v2134 = vadd.f32 %v1767, %v2133
    %v2135 = vpop.f32.mrb[0].mxu0
    %v2136 = vadd.f32 %v1771, %v2135
    %2137 = vmatprep.mubr.bf16.mxu0 0
    %2138 = vmatmul.mubr.bf16.gmra.mrb[0].mxu0 %v1722
    %v2139 = vpop.f32.mrb[0].mxu0
    %v2140 = vadd.f32 %v1767, %v2139
    %v2141 = vpop.f32.mrb[0].mxu0
    %v2142 = vadd.f32 %v1771, %v2141
    %v2143 = vpop.f32.mrb[0].mxu0
    %v2144 = vadd.f32 %v1767, %v2143
    %v2145 = vpop.f32.mrb[0].mxu0
    %v2146 = vadd.f32 %v1771, %v2145
    %2147 = vmatprep.mubr.bf16.mxu0 0
    %2148 = vmatmul.mubr.bf16.gmra.mrb[0].mxu0 %v1723
    %v2149 = vpop.f32.mrb[0].mxu0
    %v2150 = vadd.f32 %v1767, %v2149
    %v2151 = vpop.f32.mrb[0].mxu0
    %v2152 = vadd.f32 %v1771, %v2151
    %v2153 = vpop.f32.mrb[0].mxu0
    %v2154 = vadd.f32 %v1767, %v2153
    %v2155 = vpop.f32.mrb[0].mxu0
    %v2156 = vadd.f32 %v1771, %v2155
    %2157 = vdwg.mxu0
    %v2158 = vadd.f32 %v2080, 1.837877
    %v2159 = vadd.f32 %v2082, 1.837877
    %v2160 = vadd.f32 %v2084, 1.837877
    %v2161 = vadd.f32 %v2086, 1.837877
    %v2162 = vadd.f32 %v2090, 1.837877
    %v2163 = vadd.f32 %v2092, 1.837877
    %v2164 = vadd.f32 %v2094, 1.837877
    %v2165 = vadd.f32 %v2096, 1.837877
    %v2166 = vadd.f32 %v2100, 1.837877
    %v2167 = vadd.f32 %v2102, 1.837877
    %v2168 = vadd.f32 %v2104, 1.837877
    %v2169 = vadd.f32 %v2106, 1.837877
    %v2170 = vadd.f32 %v2110, 1.837877
    %v2171 = vadd.f32 %v2112, 1.837877
    %v2172 = vadd.f32 %v2114, 1.837877
    %v2173 = vadd.f32 %v2116, 1.837877
    %v2174 = vadd.f32 %v2120, 1.837877
    %v2175 = vadd.f32 %v2122, 1.837877
    %v2176 = vadd.f32 %v2124, 1.837877
    %v2177 = vadd.f32 %v2126, 1.837877
    %v2178 = vadd.f32 %v2130, 1.837877
    %v2179 = vadd.f32 %v2132, 1.837877
    %v2180 = vadd.f32 %v2134, 1.837877
    %v2181 = vadd.f32 %v2136, 1.837877
    %v2182 = vadd.f32 %v2140, 1.837877
    %v2183 = vadd.f32 %v2142, 1.837877
    %v2184 = vadd.f32 %v2144, 1.837877
    %v2185 = vadd.f32 %v2146, 1.837877
    %v2186 = vadd.f32 %v2150, 1.837877
    %v2187 = vadd.f32 %v2152, 1.837877
    %v2188 = vadd.f32 %v2154, 1.837877
    %v2189 = vadd.f32 %v2156, 1.837877
    %v2190 = vsub.f32 %v90, %v1967
    %v2191 = vsub.f32 %v91, %v1969
    %v2192 = vsub.f32 %v93, %v1971
    %v2193 = vsub.f32 %v94, %v1973
    %v2194 = vsub.f32 %v96, %v1977
    %v2195 = vsub.f32 %v97, %v1979
    %v2196 = vsub.f32 %v99, %v1981
    %v2197 = vsub.f32 %v100, %v1983
    %v2198 = vsub.f32 %v102, %v1987
    %v2199 = vsub.f32 %v103, %v1989
    %v2200 = vsub.f32 %v105, %v1991
    %v2201 = vsub.f32 %v106, %v1993
    %v2202 = vsub.f32 %v108, %v1997
    %v2203 = vsub.f32 %v109, %v1999
    %v2204 = vsub.f32 %v111, %v2001
    %v2205 = vsub.f32 %v112, %v2003
    %v2206 = vsub.f32 %v114, %v2007
    %v2207 = vsub.f32 %v115, %v2009
    %v2208 = vsub.f32 %v117, %v2011
    %v2209 = vsub.f32 %v118, %v2013
    %v2210 = vsub.f32 %v120, %v2017
    %v2211 = vsub.f32 %v121, %v2019
    %v2212 = vsub.f32 %v123, %v2021
    %v2213 = vsub.f32 %v124, %v2023
    %v2214 = vsub.f32 %v126, %v2027
    %v2215 = vsub.f32 %v127, %v2029
    %v2216 = vsub.f32 %v129, %v2031
    %v2217 = vsub.f32 %v130, %v2033
    %v2218 = vsub.f32 %v132, %v2037
    %v2219 = vsub.f32 %v133, %v2039
    %v2220 = vsub.f32 %v135, %v2041
    %v2221 = vsub.f32 %v136, %v2043
    %v2222 = vmul.f32 %v2190, %v2190
    %v2223 = vmul.f32 %v2191, %v2191
    %v2224 = vmul.f32 %v2192, %v2192
    %v2225 = vmul.f32 %v2193, %v2193
    %v2226 = vmul.f32 %v2194, %v2194
    %v2227 = vmul.f32 %v2195, %v2195
    %v2228 = vmul.f32 %v2196, %v2196
    %v2229 = vmul.f32 %v2197, %v2197
    %v2230 = vmul.f32 %v2198, %v2198
    %v2231 = vmul.f32 %v2199, %v2199
    %v2232 = vmul.f32 %v2200, %v2200
    %v2233 = vmul.f32 %v2201, %v2201
    %v2234 = vmul.f32 %v2202, %v2202
    %v2235 = vmul.f32 %v2203, %v2203
    %v2236 = vmul.f32 %v2204, %v2204
    %v2237 = vmul.f32 %v2205, %v2205
    %v2238 = vmul.f32 %v2206, %v2206
    %v2239 = vmul.f32 %v2207, %v2207
    %v2240 = vmul.f32 %v2208, %v2208
    %v2241 = vmul.f32 %v2209, %v2209
    %v2242 = vmul.f32 %v2210, %v2210
    %v2243 = vmul.f32 %v2211, %v2211
    %v2244 = vmul.f32 %v2212, %v2212
    %v2245 = vmul.f32 %v2213, %v2213
    %v2246 = vmul.f32 %v2214, %v2214
    %v2247 = vmul.f32 %v2215, %v2215
    %v2248 = vmul.f32 %v2216, %v2216
    %v2249 = vmul.f32 %v2217, %v2217
    %v2250 = vmul.f32 %v2218, %v2218
    %v2251 = vmul.f32 %v2219, %v2219
    %v2252 = vmul.f32 %v2220, %v2220
    %v2253 = vmul.f32 %v2221, %v2221
    %v2254 = vsub.f32 0.0, %v2080
    %v2255 = vsub.f32 0.0, %v2082
    %v2256 = vsub.f32 0.0, %v2084
    %v2257 = vsub.f32 0.0, %v2086
    %v2258 = vsub.f32 0.0, %v2090
    %v2259 = vsub.f32 0.0, %v2092
    %v2260 = vsub.f32 0.0, %v2094
    %v2261 = vsub.f32 0.0, %v2096
    %v2262 = vsub.f32 0.0, %v2100
    %v2263 = vsub.f32 0.0, %v2102
    %v2264 = vsub.f32 0.0, %v2104
    %v2265 = vsub.f32 0.0, %v2106
    %v2266 = vsub.f32 0.0, %v2110
    %v2267 = vsub.f32 0.0, %v2112
    %v2268 = vsub.f32 0.0, %v2114
    %v2269 = vsub.f32 0.0, %v2116
    %v2270 = vsub.f32 0.0, %v2120
    %v2271 = vsub.f32 0.0, %v2122
    %v2272 = vsub.f32 0.0, %v2124
    %v2273 = vsub.f32 0.0, %v2126
    %v2274 = vsub.f32 0.0, %v2130
    %v2275 = vsub.f32 0.0, %v2132
    %v2276 = vsub.f32 0.0, %v2134
    %v2277 = vsub.f32 0.0, %v2136
    %v2278 = vsub.f32 0.0, %v2140
    %v2279 = vsub.f32 0.0, %v2142
    %v2280 = vsub.f32 0.0, %v2144
    %v2281 = vsub.f32 0.0, %v2146
    %v2282 = vsub.f32 0.0, %v2150
    %v2283 = vsub.f32 0.0, %v2152
    %v2284 = vsub.f32 0.0, %v2154
    %v2285 = vsub.f32 0.0, %v2156
    %v2286 = vmul.f32 %v2254, 1.442695
    %v2287 = vpow.pop %v2286
    %v2288 = vmul.f32 %v2255, 1.442695
    %v2289 = vpow.pop %v2288
    %v2290 = vmul.f32 %v2256, 1.442695
    %v2291 = vpow.pop %v2290
    %v2292 = vmul.f32 %v2257, 1.442695
    %v2293 = vpow.pop %v2292
    %v2294 = vmul.f32 %v2258, 1.442695
    %v2295 = vpow.pop %v2294
    %v2296 = vmul.f32 %v2259, 1.442695
    %v2297 = vpow.pop %v2296
    %v2298 = vmul.f32 %v2260, 1.442695
    %v2299 = vpow.pop %v2298
    %v2300 = vmul.f32 %v2261, 1.442695
    %v2301 = vpow.pop %v2300
    %v2302 = vmul.f32 %v2262, 1.442695
    %v2303 = vpow.pop %v2302
    %v2304 = vmul.f32 %v2263, 1.442695
    %v2305 = vpow.pop %v2304
    %v2306 = vmul.f32 %v2264, 1.442695
    %v2307 = vpow.pop %v2306
    %v2308 = vmul.f32 %v2265, 1.442695
    %v2309 = vpow.pop %v2308
    %v2310 = vmul.f32 %v2266, 1.442695
    %v2311 = vpow.pop %v2310
    %v2312 = vmul.f32 %v2267, 1.442695
    %v2313 = vpow.pop %v2312
    %v2314 = vmul.f32 %v2268, 1.442695
    %v2315 = vpow.pop %v2314
    %v2316 = vmul.f32 %v2269, 1.442695
    %v2317 = vpow.pop %v2316
    %v2318 = vmul.f32 %v2270, 1.442695
    %v2319 = vpow.pop %v2318
    %v2320 = vmul.f32 %v2271, 1.442695
    %v2321 = vpow.pop %v2320
    %v2322 = vmul.f32 %v2272, 1.442695
    %v2323 = vpow.pop %v2322
    %v2324 = vmul.f32 %v2273, 1.442695
    %v2325 = vpow.pop %v2324
    %v2326 = vmul.f32 %v2274, 1.442695
    %v2327 = vpow.pop %v2326
    %v2328 = vmul.f32 %v2275, 1.442695
    %v2329 = vpow.pop %v2328
    %v2330 = vmul.f32 %v2276, 1.442695
    %v2331 = vpow.pop %v2330
    %v2332 = vmul.f32 %v2277, 1.442695
    %v2333 = vpow.pop %v2332
    %v2334 = vmul.f32 %v2278, 1.442695
    %v2335 = vpow.pop %v2334
    %v2336 = vmul.f32 %v2279, 1.442695
    %v2337 = vpow.pop %v2336
    %v2338 = vmul.f32 %v2280, 1.442695
    %v2339 = vpow.pop %v2338
    %v2340 = vmul.f32 %v2281, 1.442695
    %v2341 = vpow.pop %v2340
    %v2342 = vmul.f32 %v2282, 1.442695
    %v2343 = vpow.pop %v2342
    %v2344 = vmul.f32 %v2283, 1.442695
    %v2345 = vpow.pop %v2344
    %v2346 = vmul.f32 %v2284, 1.442695
    %v2347 = vpow.pop %v2346
    %v2348 = vmul.f32 %v2285, 1.442695
    %v2349 = vpow.pop %v2348
    %v2350 = vmul.f32 %v2222, %v2287
    %v2351 = vmul.f32 %v2223, %v2289
    %v2352 = vmul.f32 %v2224, %v2291
    %v2353 = vmul.f32 %v2225, %v2293
    %v2354 = vmul.f32 %v2226, %v2295
    %v2355 = vmul.f32 %v2227, %v2297
    %v2356 = vmul.f32 %v2228, %v2299
    %v2357 = vmul.f32 %v2229, %v2301
    %v2358 = vmul.f32 %v2230, %v2303
    %v2359 = vmul.f32 %v2231, %v2305
    %v2360 = vmul.f32 %v2232, %v2307
    %v2361 = vmul.f32 %v2233, %v2309
    %v2362 = vmul.f32 %v2234, %v2311
    %v2363 = vmul.f32 %v2235, %v2313
    %v2364 = vmul.f32 %v2236, %v2315
    %v2365 = vmul.f32 %v2237, %v2317
    %v2366 = vmul.f32 %v2238, %v2319
    %v2367 = vmul.f32 %v2239, %v2321
    %v2368 = vmul.f32 %v2240, %v2323
    %v2369 = vmul.f32 %v2241, %v2325
    %v2370 = vmul.f32 %v2242, %v2327
    %v2371 = vmul.f32 %v2243, %v2329
    %v2372 = vmul.f32 %v2244, %v2331
    %v2373 = vmul.f32 %v2245, %v2333
    %v2374 = vmul.f32 %v2246, %v2335
    %v2375 = vmul.f32 %v2247, %v2337
    %v2376 = vmul.f32 %v2248, %v2339
    %v2377 = vmul.f32 %v2249, %v2341
    %v2378 = vmul.f32 %v2250, %v2343
    %v2379 = vmul.f32 %v2251, %v2345
    %v2380 = vmul.f32 %v2252, %v2347
    %v2381 = vmul.f32 %v2253, %v2349
    %v2382 = vadd.f32 %v2158, %v2350
    %v2383 = vadd.f32 %v2159, %v2351
    %v2384 = vadd.f32 %v2160, %v2352
    %v2385 = vadd.f32 %v2161, %v2353
    %v2386 = vadd.f32 %v2162, %v2354
    %v2387 = vadd.f32 %v2163, %v2355
    %v2388 = vadd.f32 %v2164, %v2356
    %v2389 = vadd.f32 %v2165, %v2357
    %v2390 = vadd.f32 %v2166, %v2358
    %v2391 = vadd.f32 %v2167, %v2359
    %v2392 = vadd.f32 %v2168, %v2360
    %v2393 = vadd.f32 %v2169, %v2361
    %v2394 = vadd.f32 %v2170, %v2362
    %v2395 = vadd.f32 %v2171, %v2363
    %v2396 = vadd.f32 %v2172, %v2364
    %v2397 = vadd.f32 %v2173, %v2365
    %v2398 = vadd.f32 %v2174, %v2366
    %v2399 = vadd.f32 %v2175, %v2367
    %v2400 = vadd.f32 %v2176, %v2368
    %v2401 = vadd.f32 %v2177, %v2369
    %v2402 = vadd.f32 %v2178, %v2370
    %v2403 = vadd.f32 %v2179, %v2371
    %v2404 = vadd.f32 %v2180, %v2372
    %v2405 = vadd.f32 %v2181, %v2373
    %v2406 = vadd.f32 %v2182, %v2374
    %v2407 = vadd.f32 %v2183, %v2375
    %v2408 = vadd.f32 %v2184, %v2376
    %v2409 = vadd.f32 %v2185, %v2377
    %v2410 = vadd.f32 %v2186, %v2378
    %v2411 = vadd.f32 %v2187, %v2379
    %v2412 = vadd.f32 %v2188, %v2380
    %v2413 = vadd.f32 %v2189, %v2381
    %v2414 = vadd.f32 %v2382, %v2383
    %2415 = vadd.xlane.f32.xlu0 %v2414
    %v2416 = vpop.xlane.xlu0 %2415
    %v2417 = vadd.f32 %v2384, %v2385
    %2418 = vadd.xlane.f32.xlu0 %v2417
    %v2419 = vpop.xlane.xlu0 %2418
    %v2420 = vadd.f32 %v2386, %v2387
    %2421 = vadd.xlane.f32.xlu0 %v2420
    %v2422 = vpop.xlane.xlu0 %2421
    %v2423 = vadd.f32 %v2388, %v2389
    %2424 = vadd.xlane.f32.xlu0 %v2423
    %v2425 = vpop.xlane.xlu0 %2424
    %v2426 = vadd.f32 %v2390, %v2391
    %2427 = vadd.xlane.f32.xlu0 %v2426
    %v2428 = vpop.xlane.xlu0 %2427
    %v2429 = vadd.f32 %v2392, %v2393
    %2430 = vadd.xlane.f32.xlu0 %v2429
    %v2431 = vpop.xlane.xlu0 %2430
    %v2432 = vadd.f32 %v2394, %v2395
    %2433 = vadd.xlane.f32.xlu0 %v2432
    %v2434 = vpop.xlane.xlu0 %2433
    %v2435 = vadd.f32 %v2396, %v2397
    %2436 = vadd.xlane.f32.xlu0 %v2435
    %v2437 = vpop.xlane.xlu0 %2436
    %v2438 = vadd.f32 %v2398, %v2399
    %2439 = vadd.xlane.f32.xlu0 %v2438
    %v2440 = vpop.xlane.xlu0 %2439
    %v2441 = vadd.f32 %v2400, %v2401
    %2442 = vadd.xlane.f32.xlu0 %v2441
    %v2443 = vpop.xlane.xlu0 %2442
    %v2444 = vadd.f32 %v2402, %v2403
    %2445 = vadd.xlane.f32.xlu0 %v2444
    %v2446 = vpop.xlane.xlu0 %2445
    %v2447 = vadd.f32 %v2404, %v2405
    %2448 = vadd.xlane.f32.xlu0 %v2447
    %v2449 = vpop.xlane.xlu0 %2448
    %v2450 = vadd.f32 %v2406, %v2407
    %2451 = vadd.xlane.f32.xlu0 %v2450
    %v2452 = vpop.xlane.xlu0 %2451
    %v2453 = vadd.f32 %v2408, %v2409
    %2454 = vadd.xlane.f32.xlu0 %v2453
    %v2455 = vpop.xlane.xlu0 %2454
    %v2456 = vadd.f32 %v2410, %v2411
    %2457 = vadd.xlane.f32.xlu0 %v2456
    %v2458 = vpop.xlane.xlu0 %2457
    %v2459 = vadd.f32 %v2412, %v2413
    %2460 = vadd.xlane.f32.xlu0 %v2459
    %v2461 = vpop.xlane.xlu0 %2460
    %v2462 = vmul.f32 %v2416, -0.5
    %v2463 = vmul.f32 %v2419, -0.5
    %v2464 = vmul.f32 %v2422, -0.5
    %v2465 = vmul.f32 %v2425, -0.5
    %v2466 = vmul.f32 %v2428, -0.5
    %v2467 = vmul.f32 %v2431, -0.5
    %v2468 = vmul.f32 %v2434, -0.5
    %v2469 = vmul.f32 %v2437, -0.5
    %v2470 = vmul.f32 %v2440, -0.5
    %v2471 = vmul.f32 %v2443, -0.5
    %v2472 = vmul.f32 %v2446, -0.5
    %v2473 = vmul.f32 %v2449, -0.5
    %v2474 = vmul.f32 %v2452, -0.5
    %v2475 = vmul.f32 %v2455, -0.5
    %v2476 = vmul.f32 %v2458, -0.5
    %v2477 = vmul.f32 %v2461, -0.5
    %v2478 = vmul.f32 %v1487, %v1487
    %v2479 = vmul.f32 %v1488, %v1488
    %v2480 = vmul.f32 %v1489, %v1489
    %v2481 = vmul.f32 %v1490, %v1490
    %v2482 = vmul.f32 %v1491, %v1491
    %v2483 = vmul.f32 %v1492, %v1492
    %v2484 = vmul.f32 %v1493, %v1493
    %v2485 = vmul.f32 %v1494, %v1494
    %v2486 = vmul.f32 %v1495, %v1495
    %v2487 = vmul.f32 %v1496, %v1496
    %v2488 = vmul.f32 %v1497, %v1497
    %v2489 = vmul.f32 %v1498, %v1498
    %v2490 = vmul.f32 %v1499, %v1499
    %v2491 = vmul.f32 %v1500, %v1500
    %v2492 = vmul.f32 %v1501, %v1501
    %v2493 = vmul.f32 %v1502, %v1502
    %v2494 = vadd.f32 %v2478, 1.837877
    %v2495 = vadd.f32 %v2479, 1.837877
    %v2496 = vadd.f32 %v2480, 1.837877
    %v2497 = vadd.f32 %v2481, 1.837877
    %v2498 = vadd.f32 %v2482, 1.837877
    %v2499 = vadd.f32 %v2483, 1.837877
    %v2500 = vadd.f32 %v2484, 1.837877
    %v2501 = vadd.f32 %v2485, 1.837877
    %v2502 = vadd.f32 %v2486, 1.837877
    %v2503 = vadd.f32 %v2487, 1.837877
    %v2504 = vadd.f32 %v2488, 1.837877
    %v2505 = vadd.f32 %v2489, 1.837877
    %v2506 = vadd.f32 %v2490, 1.837877
    %v2507 = vadd.f32 %v2491, 1.837877
    %v2508 = vadd.f32 %v2492, 1.837877
    %v2509 = vadd.f32 %v2493, 1.837877
    %v2510 = vsel %vm873, %v2494, 0.0
    %2511 = vadd.xlane.f32.xlu0 %v2510
    %v2512 = vpop.xlane.xlu0 %2511
    %v2513 = vsel %vm873, %v2495, 0.0
    %2514 = vadd.xlane.f32.xlu0 %v2513
    %v2515 = vpop.xlane.xlu0 %2514
    %v2516 = vsel %vm873, %v2496, 0.0
    %2517 = vadd.xlane.f32.xlu0 %v2516
    %v2518 = vpop.xlane.xlu0 %2517
    %v2519 = vsel %vm873, %v2497, 0.0
    %2520 = vadd.xlane.f32.xlu0 %v2519
    %v2521 = vpop.xlane.xlu0 %2520
    %v2522 = vsel %vm873, %v2498, 0.0
    %2523 = vadd.xlane.f32.xlu0 %v2522
    %v2524 = vpop.xlane.xlu0 %2523
    %v2525 = vsel %vm873, %v2499, 0.0
    %2526 = vadd.xlane.f32.xlu0 %v2525
    %v2527 = vpop.xlane.xlu0 %2526
    %v2528 = vsel %vm873, %v2500, 0.0
    %2529 = vadd.xlane.f32.xlu0 %v2528
    %v2530 = vpop.xlane.xlu0 %2529
    %v2531 = vsel %vm873, %v2501, 0.0
    %2532 = vadd.xlane.f32.xlu0 %v2531
    %v2533 = vpop.xlane.xlu0 %2532
    %v2534 = vsel %vm873, %v2502, 0.0
    %2535 = vadd.xlane.f32.xlu0 %v2534
    %v2536 = vpop.xlane.xlu0 %2535
    %v2537 = vsel %vm873, %v2503, 0.0
    %2538 = vadd.xlane.f32.xlu0 %v2537
    %v2539 = vpop.xlane.xlu0 %2538
    %v2540 = vsel %vm873, %v2504, 0.0
    %2541 = vadd.xlane.f32.xlu0 %v2540
    %v2542 = vpop.xlane.xlu0 %2541
    %v2543 = vsel %vm873, %v2505, 0.0
    %2544 = vadd.xlane.f32.xlu0 %v2543
    %v2545 = vpop.xlane.xlu0 %2544
    %v2546 = vsel %vm873, %v2506, 0.0
    %2547 = vadd.xlane.f32.xlu0 %v2546
    %v2548 = vpop.xlane.xlu0 %2547
    %v2549 = vsel %vm873, %v2507, 0.0
    %2550 = vadd.xlane.f32.xlu0 %v2549
    %v2551 = vpop.xlane.xlu0 %2550
    %v2552 = vsel %vm873, %v2508, 0.0
    %2553 = vadd.xlane.f32.xlu0 %v2552
    %v2554 = vpop.xlane.xlu0 %2553
    %v2555 = vsel %vm873, %v2509, 0.0
    %2556 = vadd.xlane.f32.xlu0 %v2555
    %v2557 = vpop.xlane.xlu0 %2556
    %v2558 = vmul.f32 %v2512, -0.5
    %v2559 = vmul.f32 %v2515, -0.5
    %v2560 = vmul.f32 %v2518, -0.5
    %v2561 = vmul.f32 %v2521, -0.5
    %v2562 = vmul.f32 %v2524, -0.5
    %v2563 = vmul.f32 %v2527, -0.5
    %v2564 = vmul.f32 %v2530, -0.5
    %v2565 = vmul.f32 %v2533, -0.5
    %v2566 = vmul.f32 %v2536, -0.5
    %v2567 = vmul.f32 %v2539, -0.5
    %v2568 = vmul.f32 %v2542, -0.5
    %v2569 = vmul.f32 %v2545, -0.5
    %v2570 = vmul.f32 %v2548, -0.5
    %v2571 = vmul.f32 %v2551, -0.5
    %v2572 = vmul.f32 %v2554, -0.5
    %v2573 = vmul.f32 %v2557, -0.5
    %v2574 = vadd.f32 %v540, 1.837877
    %v2575 = vadd.f32 %v546, 1.837877
    %v2576 = vadd.f32 %v552, 1.837877
    %v2577 = vadd.f32 %v558, 1.837877
    %v2578 = vadd.f32 %v564, 1.837877
    %v2579 = vadd.f32 %v570, 1.837877
    %v2580 = vadd.f32 %v576, 1.837877
    %v2581 = vadd.f32 %v582, 1.837877
    %v2582 = vadd.f32 %v588, 1.837877
    %v2583 = vadd.f32 %v594, 1.837877
    %v2584 = vadd.f32 %v600, 1.837877
    %v2585 = vadd.f32 %v606, 1.837877
    %v2586 = vadd.f32 %v612, 1.837877
    %v2587 = vadd.f32 %v618, 1.837877
    %v2588 = vadd.f32 %v624, 1.837877
    %v2589 = vadd.f32 %v630, 1.837877
    %v2590 = vmul.f32 %v92, %v92
    %v2591 = vmul.f32 %v95, %v95
    %v2592 = vmul.f32 %v98, %v98
    %v2593 = vmul.f32 %v101, %v101
    %v2594 = vmul.f32 %v104, %v104
    %v2595 = vmul.f32 %v107, %v107
    %v2596 = vmul.f32 %v110, %v110
    %v2597 = vmul.f32 %v113, %v113
    %v2598 = vmul.f32 %v116, %v116
    %v2599 = vmul.f32 %v119, %v119
    %v2600 = vmul.f32 %v122, %v122
    %v2601 = vmul.f32 %v125, %v125
    %v2602 = vmul.f32 %v128, %v128
    %v2603 = vmul.f32 %v131, %v131
    %v2604 = vmul.f32 %v134, %v134
    %v2605 = vmul.f32 %v137, %v137
    %v2606 = vadd.f32 %v2574, %v2590
    %v2607 = vadd.f32 %v2575, %v2591
    %v2608 = vadd.f32 %v2576, %v2592
    %v2609 = vadd.f32 %v2577, %v2593
    %v2610 = vadd.f32 %v2578, %v2594
    %v2611 = vadd.f32 %v2579, %v2595
    %v2612 = vadd.f32 %v2580, %v2596
    %v2613 = vadd.f32 %v2581, %v2597
    %v2614 = vadd.f32 %v2582, %v2598
    %v2615 = vadd.f32 %v2583, %v2599
    %v2616 = vadd.f32 %v2584, %v2600
    %v2617 = vadd.f32 %v2585, %v2601
    %v2618 = vadd.f32 %v2586, %v2602
    %v2619 = vadd.f32 %v2587, %v2603
    %v2620 = vadd.f32 %v2588, %v2604
    %v2621 = vadd.f32 %v2589, %v2605
    %v2622 = vsel %vm873, %v2606, 0.0
    %2623 = vadd.xlane.f32.xlu0 %v2622
    %v2624 = vpop.xlane.xlu0 %2623
    %v2625 = vsel %vm873, %v2607, 0.0
    %2626 = vadd.xlane.f32.xlu0 %v2625
    %v2627 = vpop.xlane.xlu0 %2626
    %v2628 = vsel %vm873, %v2608, 0.0
    %2629 = vadd.xlane.f32.xlu0 %v2628
    %v2630 = vpop.xlane.xlu0 %2629
    %v2631 = vsel %vm873, %v2609, 0.0
    %2632 = vadd.xlane.f32.xlu0 %v2631
    %v2633 = vpop.xlane.xlu0 %2632
    %v2634 = vsel %vm873, %v2610, 0.0
    %2635 = vadd.xlane.f32.xlu0 %v2634
    %v2636 = vpop.xlane.xlu0 %2635
    %v2637 = vsel %vm873, %v2611, 0.0
    %2638 = vadd.xlane.f32.xlu0 %v2637
    %v2639 = vpop.xlane.xlu0 %2638
    %v2640 = vsel %vm873, %v2612, 0.0
    %2641 = vadd.xlane.f32.xlu0 %v2640
    %v2642 = vpop.xlane.xlu0 %2641
    %v2643 = vsel %vm873, %v2613, 0.0
    %2644 = vadd.xlane.f32.xlu0 %v2643
    %v2645 = vpop.xlane.xlu0 %2644
    %v2646 = vsel %vm873, %v2614, 0.0
    %2647 = vadd.xlane.f32.xlu0 %v2646
    %v2648 = vpop.xlane.xlu0 %2647
    %v2649 = vsel %vm873, %v2615, 0.0
    %2650 = vadd.xlane.f32.xlu0 %v2649
    %v2651 = vpop.xlane.xlu0 %2650
    %v2652 = vsel %vm873, %v2616, 0.0
    %2653 = vadd.xlane.f32.xlu0 %v2652
    %v2654 = vpop.xlane.xlu0 %2653
    %v2655 = vsel %vm873, %v2617, 0.0
    %2656 = vadd.xlane.f32.xlu0 %v2655
    %v2657 = vpop.xlane.xlu0 %2656
    %v2658 = vsel %vm873, %v2618, 0.0
    %2659 = vadd.xlane.f32.xlu0 %v2658
    %v2660 = vpop.xlane.xlu0 %2659
    %v2661 = vsel %vm873, %v2619, 0.0
    %2662 = vadd.xlane.f32.xlu0 %v2661
    %v2663 = vpop.xlane.xlu0 %2662
    %v2664 = vsel %vm873, %v2620, 0.0
    %2665 = vadd.xlane.f32.xlu0 %v2664
    %v2666 = vpop.xlane.xlu0 %2665
    %v2667 = vsel %vm873, %v2621, 0.0
    %2668 = vadd.xlane.f32.xlu0 %v2667
    %v2669 = vpop.xlane.xlu0 %2668
    %v2670 = vmul.f32 %v2624, -0.5
    %v2671 = vmul.f32 %v2627, -0.5
    %v2672 = vmul.f32 %v2630, -0.5
    %v2673 = vmul.f32 %v2633, -0.5
    %v2674 = vmul.f32 %v2636, -0.5
    %v2675 = vmul.f32 %v2639, -0.5
    %v2676 = vmul.f32 %v2642, -0.5
    %v2677 = vmul.f32 %v2645, -0.5
    %v2678 = vmul.f32 %v2648, -0.5
    %v2679 = vmul.f32 %v2651, -0.5
    %v2680 = vmul.f32 %v2654, -0.5
    %v2681 = vmul.f32 %v2657, -0.5
    %v2682 = vmul.f32 %v2660, -0.5
    %v2683 = vmul.f32 %v2663, -0.5
    %v2684 = vmul.f32 %v2666, -0.5
    %v2685 = vmul.f32 %v2669, -0.5
    %v2686 = vadd.f32 %v2462, %v2558
    %v2687 = vadd.f32 %v2463, %v2559
    %v2688 = vadd.f32 %v2464, %v2560
    %v2689 = vadd.f32 %v2465, %v2561
    %v2690 = vadd.f32 %v2466, %v2562
    %v2691 = vadd.f32 %v2467, %v2563
    %v2692 = vadd.f32 %v2468, %v2564
    %v2693 = vadd.f32 %v2469, %v2565
    %v2694 = vadd.f32 %v2470, %v2566
    %v2695 = vadd.f32 %v2471, %v2567
    %v2696 = vadd.f32 %v2472, %v2568
    %v2697 = vadd.f32 %v2473, %v2569
    %v2698 = vadd.f32 %v2474, %v2570
    %v2699 = vadd.f32 %v2475, %v2571
    %v2700 = vadd.f32 %v2476, %v2572
    %v2701 = vadd.f32 %v2477, %v2573
    %v2702 = vsub.f32 %v2686, %v2670
    %v2703 = vsub.f32 %v2687, %v2671
    %v2704 = vsub.f32 %v2688, %v2672
    %v2705 = vsub.f32 %v2689, %v2673
    %v2706 = vsub.f32 %v2690, %v2674
    %v2707 = vsub.f32 %v2691, %v2675
    %v2708 = vsub.f32 %v2692, %v2676
    %v2709 = vsub.f32 %v2693, %v2677
    %v2710 = vsub.f32 %v2694, %v2678
    %v2711 = vsub.f32 %v2695, %v2679
    %v2712 = vsub.f32 %v2696, %v2680
    %v2713 = vsub.f32 %v2697, %v2681
    %v2714 = vsub.f32 %v2698, %v2682
    %v2715 = vsub.f32 %v2699, %v2683
    %v2716 = vsub.f32 %v2700, %v2684
    %v2717 = vsub.f32 %v2701, %v2685
    %v2734 = vlaneseq
    %v2735 = vand.u32 %v2734, 127
    %v2736 = vlaneseq
    %v2737 = vshrl.u32 %v2736, 7
    %v2738 = vsub.s32 %v2735, %v2737
    %v2739 = vrot.slane %v2702, %v2738
    %v2740 = vadd.s32 %v2735, 4294967288
    %v2741 = vlaneseq
    %v2742 = vshrl.u32 %v2741, 7
    %v2743 = vsub.s32 %v2740, %v2742
    %v2744 = vrot.slane %v2703, %v2743
    %vm2745 = vcmask 130112
    %v2746 = vsel %vm2745, %v2744, %v2739
    %v2747 = vadd.s32 %v2735, 4294967280
    %v2748 = vlaneseq
    %v2749 = vshrl.u32 %v2748, 7
    %v2750 = vsub.s32 %v2747, %v2749
    %v2751 = vrot.slane %v2704, %v2750
    %vm2752 = vcmask 195712
    %v2753 = vsel %vm2752, %v2751, %v2746
    %v2754 = vadd.s32 %v2735, 4294967272
    %v2755 = vlaneseq
    %v2756 = vshrl.u32 %v2755, 7
    %v2757 = vsub.s32 %v2754, %v2756
    %v2758 = vrot.slane %v2705, %v2757
    %vm2759 = vcmask 261312
    %v2760 = vsel %vm2759, %v2758, %v2753
    %v2761 = vadd.s32 %v2735, 4294967264
    %v2762 = vlaneseq
    %v2763 = vshrl.u32 %v2762, 7
    %v2764 = vsub.s32 %v2761, %v2763
    %v2765 = vrot.slane %v2706, %v2764
    %vm2766 = vcmask 326912
    %v2767 = vsel %vm2766, %v2765, %v2760
    %v2768 = vadd.s32 %v2735, 4294967256
    %v2769 = vlaneseq
    %v2770 = vshrl.u32 %v2769, 7
    %v2771 = vsub.s32 %v2768, %v2770
    %v2772 = vrot.slane %v2707, %v2771
    %vm2773 = vcmask 392512
    %v2774 = vsel %vm2773, %v2772, %v2767
    %v2775 = vadd.s32 %v2735, 4294967248
    %v2776 = vlaneseq
    %v2777 = vshrl.u32 %v2776, 7
    %v2778 = vsub.s32 %v2775, %v2777
    %v2779 = vrot.slane %v2708, %v2778
    %vm2780 = vcmask 458112
    %v2781 = vsel %vm2780, %v2779, %v2774
    %v2782 = vadd.s32 %v2735, 4294967240
    %v2783 = vlaneseq
    %v2784 = vshrl.u32 %v2783, 7
    %v2785 = vsub.s32 %v2782, %v2784
    %v2786 = vrot.slane %v2709, %v2785
    %vm2787 = vcmask 523712
    %v2788 = vsel %vm2787, %v2786, %v2781
    %v2789 = vadd.s32 %v2735, 4294967232
    %v2790 = vlaneseq
    %v2791 = vshrl.u32 %v2790, 7
    %v2792 = vsub.s32 %v2789, %v2791
    %v2793 = vrot.slane %v2710, %v2792
    %vm2794 = vcmask 589312
    %v2795 = vsel %vm2794, %v2793, %v2788
    %v2796 = vadd.s32 %v2735, 4294967224
    %v2797 = vlaneseq
    %v2798 = vshrl.u32 %v2797, 7
    %v2799 = vsub.s32 %v2796, %v2798
    %v2800 = vrot.slane %v2711, %v2799
    %vm2801 = vcmask 654912
    %v2802 = vsel %vm2801, %v2800, %v2795
    %v2803 = vadd.s32 %v2735, 4294967216
    %v2804 = vlaneseq
    %v2805 = vshrl.u32 %v2804, 7
    %v2806 = vsub.s32 %v2803, %v2805
    %v2807 = vrot.slane %v2712, %v2806
    %vm2808 = vcmask 720512
    %v2809 = vsel %vm2808, %v2807, %v2802
    %v2810 = vadd.s32 %v2735, 4294967208
    %v2811 = vlaneseq
    %v2812 = vshrl.u32 %v2811, 7
    %v2813 = vsub.s32 %v2810, %v2812
    %v2814 = vrot.slane %v2713, %v2813
    %vm2815 = vcmask 786112
    %v2816 = vsel %vm2815, %v2814, %v2809
    %v2817 = vadd.s32 %v2735, 4294967200
    %v2818 = vlaneseq
    %v2819 = vshrl.u32 %v2818, 7
    %v2820 = vsub.s32 %v2817, %v2819
    %v2821 = vrot.slane %v2714, %v2820
    %vm2822 = vcmask 851712
    %v2823 = vsel %vm2822, %v2821, %v2816
    %v2824 = vadd.s32 %v2735, 4294967192
    %v2825 = vlaneseq
    %v2826 = vshrl.u32 %v2825, 7
    %v2827 = vsub.s32 %v2824, %v2826
    %v2828 = vrot.slane %v2715, %v2827
    %vm2829 = vcmask 917312
    %v2830 = vsel %vm2829, %v2828, %v2823
    %v2831 = vadd.s32 %v2735, 4294967184
    %v2832 = vlaneseq
    %v2833 = vshrl.u32 %v2832, 7
    %v2834 = vsub.s32 %v2831, %v2833
    %v2835 = vrot.slane %v2716, %v2834
    %vm2836 = vcmask 982912
    %v2837 = vsel %vm2836, %v2835, %v2830
    %v2838 = vadd.s32 %v2735, 4294967176
    %v2839 = vlaneseq
    %v2840 = vshrl.u32 %v2839, 7
    %v2841 = vsub.s32 %v2838, %v2840
    %v2842 = vrot.slane %v2717, %v2841
    %vm2843 = vcmask 1048512
    %v2844 = vsel %vm2843, %v2842, %v2837
    %2846 = vst [vmem:[#allocation11] sm:$0x1] %v2844
    // Predicated region
    $region42: #{tpu_custom_call.1} parent=1 // pred_check
      _
    $region43: #{tpu_custom_call.1} parent=1 // pred_check_branch
      %2848 = sbr.rel (0) target = $region45
    $region44: #{tpu_custom_call.1} parent=1 // pred_region
      %s2850 = ssub.s32 16, 16
      %2851 = vsyncadd [#allocation4], %s2850
      %s2853 = sshll.u32 [#allocation11], 4
      %s2854 = int_to_ptr.vmem [resolvable:$true] %s2853
      %2856 = dma.vmem_to_hbm [thread:$0]  %s2854, 16, %s5, [#allocation4]
    $region45: #{tpu_custom_call.1} parent=1 // pred_fallthru
      _
    // Predicated region
    $region46: #{tpu_custom_call.1} parent=1 // pred_check
      _
    $region47: #{tpu_custom_call.1} parent=1 // pred_check_branch
      %2858 = sbr.rel (0) target = $region49
    $region48: #{tpu_custom_call.1} parent=1 // pred_region
      %2859 = dma.done [#allocation4], 16
    $region49: #{tpu_custom_call.1} parent=1 // pred_fallthru
      _
    %2860 = vsyncpa [#allocation3], 1
    %2861 = vsyncpa [#allocation6], 1
    %2862 = vsyncpa [#allocation9], 1
    %2863 = vsyncpa [#allocation4], 1

</llo_original>
